<compile_context>
chip_gen: v6e
topology: v6e:2x2x1
jax: 0.10.0
libtpu: 0.0.40
codegen_flags: <defaults>
</compile_context>

<pallas_src>
import functools

import jax
import jax.numpy as jnp
from jax.experimental import pallas as pl
from jax.experimental.pallas import tpu as pltpu

KH = KW = 3  # 3x3 conv, stride=1, padding=1, bias=False


def _td_conv_kernel(w_ref, a_ref, o_ref, *, wt):
    """One (image n, cout-block) step of the time-distributed 3x3 conv.

    w_ref: [KH, CBLK, 3*Cin]      bf16 per-kh weight slabs (resident)
    a_ref: [3*Cin, (H+2)*W*T]     bf16 kw-folded, H-halo'd image n
    o_ref: [CBLK, H*W*T]          f32 lane-dense output block
    """
    m = o_ref.shape[-1]                               # H*W*T
    # Tap kh reads the static, contiguous lane window [kh*W*T, kh*W*T + m):
    # shifting by one padded row == shifting by W*T lanes.
    acc = jnp.dot(w_ref[0], a_ref[:, 0:m],
                  preferred_element_type=jnp.float32)
    for kh in range(1, KH):
        start = kh * wt                               # static offset
        acc = acc + jnp.dot(w_ref[kh], a_ref[:, start:start + m],
                            preferred_element_type=jnp.float32)
    o_ref[...] = acc.astype(o_ref.dtype)


def td_layer_conv2d(x_ncHWt, w_oihw):
    """tdLayer(Conv2d(Cin,Cout,3,padding=1,bias=False), bn=None) forward.

    x_ncHWt: [N, Cin, H, W, T]   (PyTorch NCHW + trailing time axis)
    w_oihw : [Cout, Cin, 3, 3]   (PyTorch conv weight)
    returns: [N, Cout, H, W, T]  (float32)
    """
    N, Cin, H, W, T = x_ncHWt.shape
    Cout = w_oihw.shape[0]
    WT = W * T
    M = H * WT                    # output lanes per image (h, w, t) order
    K3 = KW * Cin                 # kw folded into the contraction axis
    Hp = H + 2                    # H halo (padding=1)

    # ---- wrapper-side layout: cast to bf16 BEFORE any expansion ------------
    xb = x_ncHWt.astype(jnp.bfloat16)
    wb = w_oihw.astype(jnp.bfloat16)

    xw = jnp.pad(xb, ((0, 0), (0, 0), (0, 0), (1, 1), (0, 0)))   # pad W by 1
    # Fold the 3 kw taps into the channel axis: K index = kw*Cin + ci.
    a3 = jnp.concatenate([xw[:, :, :, kw:kw + W, :] for kw in range(KW)],
                         axis=1)                                  # [N,3Cin,H,W,T]
    a3 = jnp.pad(a3, ((0, 0), (0, 0), (1, 1), (0, 0), (0, 0)))    # pad H (halo)
    a3 = a3.reshape(N, K3, Hp * WT)                               # lanes = (h,w,t)

    # Per-kh weight slabs, K ordering matching a3: wk[kh, co, kw*Cin + ci].
    wk = jnp.transpose(wb, (2, 0, 3, 1)).reshape(KH, Cout, K3)

    # ---- tiling -------------------------------------------------------------
    cblk = 256 if (Cout > 256 and Cout % 256 == 0) else Cout
    nc = Cout // cblk
    grid = (N, nc)

    # VMEM budget (double-buffered blocks) with headroom, v7x-safe cap.
    a_bytes = K3 * Hp * WT * 2
    w_bytes = KH * cblk * K3 * 2
    o_bytes = cblk * M * 4
    vmem_needed = 2 * (a_bytes + w_bytes + o_bytes)
    vmem_limit = int(min(max(8 * 1024 * 1024, 2 * vmem_needed),
                         48 * 1024 * 1024))

    flops = 2 * N * Cout * (KH * KW * Cin) * M
    bytes_accessed = int(a3.size * 2 + wk.size * 2 + N * Cout * M * 4)

    y = pl.pallas_call(
        functools.partial(_td_conv_kernel, wt=WT),
        out_shape=jax.ShapeDtypeStruct((N, Cout, M), jnp.float32),
        grid_spec=pltpu.PrefetchScalarGridSpec(
            num_scalar_prefetch=0,
            grid=grid,
            in_specs=[
                # Weights: constant index map -> resident, no re-DMA per step.
                pl.BlockSpec((KH, cblk, K3), lambda n, c: (0, c, 0)),
                # Halo'd, kw-folded activations of image n (full last two dims).
                pl.BlockSpec((None, K3, Hp * WT), lambda n, c: (n, 0, 0)),
            ],
            out_specs=pl.BlockSpec((None, cblk, M), lambda n, c: (n, c, 0)),
        ),
        compiler_params=pltpu.CompilerParams(
            dimension_semantics=("parallel", "parallel"),
            vmem_limit_bytes=vmem_limit,
        ),
        cost_estimate=pl.CostEstimate(
            flops=flops, transcendentals=0, bytes_accessed=bytes_accessed),
    )(wk, a3)

    # bn = Straight() -> identity.  Lane order (h, w, t) is already the
    # PyTorch [N, Cout, H, W, T] layout.
    return y.reshape(N, Cout, H, W, T)


def _reference(x_ncHWt, w_oihw):
    """Pure-JAX reference: per-timestep conv2d, stacked on the last axis.

    Inputs are rounded to bf16 (matching the kernel's MXU operand precision)
    and the conv runs at HIGHEST precision with f32 accumulation, so a tight
    tolerance still validates all layout / indexing logic.
    """
    xs = x_ncHWt.astype(jnp.bfloat16).astype(jnp.float32)
    ws = w_oihw.astype(jnp.bfloat16).astype(jnp.float32)
    T = x_ncHWt.shape[-1]
    outs = []
    for t in range(T):
        yt = jax.lax.conv_general_dilated(
            xs[..., t], ws, window_strides=(1, 1), padding="SAME",
            dimension_numbers=("NCHW", "OIHW", "NCHW"),
            precision=jax.lax.Precision.HIGHEST)
        outs.append(yt)
    return jnp.stack(outs, axis=-1)                    # [N, Cout, H, W, T]


if __name__ == "__main__":
    key = jax.random.PRNGKey(0)
    kx, kw = jax.random.split(key)

    N, Cin, Cout, H, W, T = 2, 4, 8, 16, 16, 8
    x = jax.random.normal(kx, (N, Cin, H, W, T), dtype=jnp.float32)
    # Deterministic Kaiming-ish init for the wrapped Conv2d weight (bias=False).
    fan_in = Cin * KH * KW
    w = jax.random.normal(kw, (Cout, Cin, KH, KW), dtype=jnp.float32) / jnp.sqrt(fan_in)

    out = jax.block_until_ready(jax.jit(td_layer_conv2d)(x, w))
    ref = jax.block_until_ready(_reference(x, w))

    assert out.shape == (N, Cout, H, W, T), out.shape
    assert jnp.allclose(out, ref, atol=2e-3, rtol=2e-3), \
        float(jnp.max(jnp.abs(out - ref)))
    print("KERNEL_OK")
</pallas_src>

<mosaic_0001>
module attributes {stable_mosaic.version = 11 : i64} {
  func.func @_td_conv_kernel(%arg0: i32, %arg1: i32, %arg2: memref<3x8x12xbf16, #tpu.memory_space<vmem>>, %arg3: memref<1x12x2304xbf16, #tpu.memory_space<vmem>>, %arg4: memref<1x8x2048xf32, #tpu.memory_space<vmem>>) attributes {dimension_semantics = [#tpu.dimension_semantics<parallel>, #tpu.dimension_semantics<parallel>], iteration_bounds = array<i64: 2, 1>, scalar_prefetch = 0 : i64, scratch_operands = 0 : i64, tpu.core_type = #tpu.core_type<tc>, window_params = [{transform_indices = @transform_0, window_bounds = array<i64: 3, 8, 12>}, {transform_indices = @transform_1, window_bounds = array<i64: 1, 12, 2304>}, {transform_indices = @transform_2, window_bounds = array<i64: 1, 8, 2048>}]} {
    %c0 = arith.constant 0 : index
    %c0_0 = arith.constant 0 : index
    %c0_1 = arith.constant 0 : index
    %0 = vector.load %arg2[%c0, %c0_0, %c0_1] : memref<3x8x12xbf16, #tpu.memory_space<vmem>>, vector<1x8x12xbf16>
    %1 = vector.shape_cast %0 : vector<1x8x12xbf16> to vector<8x12xbf16>
    %c0_2 = arith.constant 0 : index
    %c0_3 = arith.constant 0 : index
    %c0_4 = arith.constant 0 : index
    %2 = vector.load %arg3[%c0_2, %c0_3, %c0_4] : memref<1x12x2304xbf16, #tpu.memory_space<vmem>>, vector<1x12x2048xbf16>
    %3 = vector.shape_cast %2 : vector<1x12x2048xbf16> to vector<12x2048xbf16>
    %cst = arith.constant dense<0.000000e+00> : vector<8x2048xf32>
    %4 = tpu.matmul %1, %3, %cst {dimension_numbers = #tpu.dot_dimension_numbers<[1], [0], [0], [1], [0, 0, 1, 1], [], []>} : vector<8x12xbf16>, vector<12x2048xbf16>, vector<8x2048xf32> -> vector<8x2048xf32>
    %c1 = arith.constant 1 : index
    %c0_5 = arith.constant 0 : index
    %c0_6 = arith.constant 0 : index
    %5 = vector.load %arg2[%c1, %c0_5, %c0_6] : memref<3x8x12xbf16, #tpu.memory_space<vmem>>, vector<1x8x12xbf16>
    %6 = vector.shape_cast %5 : vector<1x8x12xbf16> to vector<8x12xbf16>
    %c0_7 = arith.constant 0 : index
    %c0_8 = arith.constant 0 : index
    %c128 = arith.constant 128 : index
    %7 = vector.load %arg3[%c0_7, %c0_8, %c128] : memref<1x12x2304xbf16, #tpu.memory_space<vmem>>, vector<1x12x2048xbf16>
    %8 = vector.shape_cast %7 : vector<1x12x2048xbf16> to vector<12x2048xbf16>
    %cst_9 = arith.constant dense<0.000000e+00> : vector<8x2048xf32>
    %9 = tpu.matmul %6, %8, %cst_9 {dimension_numbers = #tpu.dot_dimension_numbers<[1], [0], [0], [1], [0, 0, 1, 1], [], []>} : vector<8x12xbf16>, vector<12x2048xbf16>, vector<8x2048xf32> -> vector<8x2048xf32>
    %10 = arith.addf %4, %9 : vector<8x2048xf32>
    %c2 = arith.constant 2 : index
    %c0_10 = arith.constant 0 : index
    %c0_11 = arith.constant 0 : index
    %11 = vector.load %arg2[%c2, %c0_10, %c0_11] : memref<3x8x12xbf16, #tpu.memory_space<vmem>>, vector<1x8x12xbf16>
    %12 = vector.shape_cast %11 : vector<1x8x12xbf16> to vector<8x12xbf16>
    %c0_12 = arith.constant 0 : index
    %c0_13 = arith.constant 0 : index
    %c256 = arith.constant 256 : index
    %13 = vector.load %arg3[%c0_12, %c0_13, %c256] : memref<1x12x2304xbf16, #tpu.memory_space<vmem>>, vector<1x12x2048xbf16>
    %14 = vector.shape_cast %13 : vector<1x12x2048xbf16> to vector<12x2048xbf16>
    %cst_14 = arith.constant dense<0.000000e+00> : vector<8x2048xf32>
    %15 = tpu.matmul %12, %14, %cst_14 {dimension_numbers = #tpu.dot_dimension_numbers<[1], [0], [0], [1], [0, 0, 1, 1], [], []>} : vector<8x12xbf16>, vector<12x2048xbf16>, vector<8x2048xf32> -> vector<8x2048xf32>
    %16 = arith.addf %10, %15 : vector<8x2048xf32>
    %c0_15 = arith.constant 0 : index
    %c0_16 = arith.constant 0 : index
    %c0_17 = arith.constant 0 : index
    %17 = vector.load %arg4[%c0_15, %c0_16, %c0_17] : memref<1x8x2048xf32, #tpu.memory_space<vmem>>, vector<1x8x2048xf32>
    %18 = vector.shape_cast %17 : vector<1x8x2048xf32> to vector<8x2048xf32>
    %19 = vector.shape_cast %16 : vector<8x2048xf32> to vector<1x8x2048xf32>
    tpu.vector_store %arg4[%c0_15, %c0_16, %c0_17], %19 {strides = array<i32>} : memref<1x8x2048xf32, #tpu.memory_space<vmem>>, vector<1x8x2048xf32>,
    return
  }
  func.func @transform_0(%arg0: i32, %arg1: i32) -> (i32, i32, i32) {
    %c0_i32 = arith.constant 0 : i32
    %c0_i32_0 = arith.constant 0 : i32
    %c0_i32_1 = arith.constant 0 : i32
    return %c0_i32, %arg1, %c0_i32_0 : i32, i32, i32
  }
  func.func @transform_1(%arg0: i32, %arg1: i32) -> (i32, i32, i32) {
    %c0_i32 = arith.constant 0 : i32
    %c0_i32_0 = arith.constant 0 : i32
    %c0_i32_1 = arith.constant 0 : i32
    return %arg0, %c0_i32, %c0_i32_0 : i32, i32, i32
  }
  func.func @transform_2(%arg0: i32, %arg1: i32) -> (i32, i32, i32) {
    %c0_i32 = arith.constant 0 : i32
    %c0_i32_0 = arith.constant 0 : i32
    return %arg0, %arg1, %c0_i32 : i32, i32, i32
  }
}

</mosaic_0001>

<llo_original>
// kernel: td_layer_conv2d.1
$region0: #{td_layer_conv2d.1}
  #allocation0 [shape = 'u32[]', space=smem, size = 0x4, offset = 0x4, fixed_abs, tag = 'smem constant byte address 0x4 - core index']
  #allocation1 [shape = 'u32[144,128]{1,0:T(1,128)}', space=vmem, size = 0x12000, scoped, tag = 'internal scratch']
  %s0 = inlined_call_operand.vmem [shape: bf16[3,8,12], index: 0, kind: input, shape index: {}]
  %s1 = inlined_call_operand.vmem [shape: bf16[2,12,2304], index: 1, kind: input, shape index: {}]
  %s2 = inlined_call_operand.vmem [shape: f32[2,8,2048], index: 2, kind: output, shape index: {}]
  %s3 = sld [smem:[#allocation0]]
  $region41: #{td_layer_conv2d.1} parent=0
    _
  %s5 = ssub.s32 1, %s3
  %s6 = scalar_select 0, %s5, %s3
  loop: start=0, step=1, limit=4
  $region2: #{td_layer_conv2d.1} parent=0 // loop_pre_header
    _
  $region3: #{td_layer_conv2d.1} parent=0 // loop_header
    %s8 = sphi 0, %s12
    %p9 = scmp.ge.s32.totalorder %s8, 4
    %s15 = sphi 0, %s27
    %s16 = sphi 0, %s23
    %s17 = sphi 0, %s15
    %s18 = sphi 0, %s16
    %s19 = sphi 0, %s17
    %s20 = sphi 0, %s18
    %s30 = sphi 0, %s32
    %s33 = sphi 0, %s30
    %s34 = sphi 0, %s33
    %s50 = sphi 0, %s34
    %s56 = sphi 0, %s58
    %s59 = sphi 0, %s56
    %s60 = sphi 0, %s59
    %s76 = sphi 0, %s60
    %s84 = sphi 0, %s86
    %s87 = sphi 0, %s84
    %s88 = sphi 0, %s87
    %s104 = sphi 0, %s88
  $region4: #{td_layer_conv2d.1} parent=0 // loop_header_branch
    %11 = sbr.rel (%p9) target = $region8
  $region5: #{td_layer_conv2d.1} parent=0 // loop_body
    %s13 = ssub.s32 %s8, 1
    %s14 = ssub.s32 %s8, 2
    %s21 = sadd.s32 1, %s16
    %p22 = scmp.ge.s32.totalorder %s21, 1
    %s23 = scalar_select %p22, 0, %s21
    %s24 = sadd.s32 1, %s15
    %s25 = scalar_select %p22, %s24, %s15
    %p26 = scmp.ge.s32.totalorder %s25, 2
    %s27 = scalar_select %p26, 0, %s25
    %s28 = ssub.s32 %s16, %s23
    %p29 = scmp.eq.s32.totalorder %s28, 0
    %s31 = sadd.s32 %s30, 1
    %s32 = scalar_select %p29, %s30, %s31
    %p35 = pneg %p29
    %p36 = scmp.eq.s32.totalorder %s8, 1
    %p37 = por %p35, %p36
    %p38 = scmp.ne.s32.totalorder %s30, %s33
    %p39 = scmp.eq.s32.totalorder %s8, 0
    %p40 = por %p38, %p39
    %p41 = scmp.ne.s32.totalorder %s30, %s33
    %p42 = scmp.eq.s32.totalorder %s13, 1
    %p43 = por %p41, %p42
    %p44 = scmp.ne.s32.totalorder %s33, %s34
    %p45 = scmp.eq.s32.totalorder %s13, 0
    %p46 = por %p44, %p45
    %p47 = scmp.ne.s32.totalorder %s33, %s34
    %p48 = scmp.eq.s32.totalorder %s14, 1
    %p49 = por %p47, %p48
    %p51 = scmp.ne.s32.totalorder %s34, %s50
    %p52 = scmp.eq.s32.totalorder %s14, 0
    %p53 = por %p51, %p52
    %s54 = ssub.s32 %s15, %s27
    %p55 = scmp.eq.s32.totalorder %s54, 0
    %s57 = sadd.s32 %s56, 1
    %s58 = scalar_select %p55, %s56, %s57
    %p61 = pneg %p55
    %p62 = scmp.eq.s32.totalorder %s8, 1
    %p63 = por %p61, %p62
    %p64 = scmp.ne.s32.totalorder %s56, %s59
    %p65 = scmp.eq.s32.totalorder %s8, 0
    %p66 = por %p64, %p65
    %p67 = scmp.ne.s32.totalorder %s56, %s59
    %p68 = scmp.eq.s32.totalorder %s13, 1
    %p69 = por %p67, %p68
    %p70 = scmp.ne.s32.totalorder %s59, %s60
    %p71 = scmp.eq.s32.totalorder %s13, 0
    %p72 = por %p70, %p71
    %p73 = scmp.ne.s32.totalorder %s59, %s60
    %p74 = scmp.eq.s32.totalorder %s14, 1
    %p75 = por %p73, %p74
    %p77 = scmp.ne.s32.totalorder %s60, %s76
    %p78 = scmp.eq.s32.totalorder %s14, 0
    %p79 = por %p77, %p78
    %s80 = ssub.s32 %s15, %s27
    %s81 = ssub.s32 %s16, %s23
    %s82 = sor.u32 %s80, %s81
    %p83 = scmp.eq.s32.totalorder %s82, 0
    %s85 = sadd.s32 %s84, 1
    %s86 = scalar_select %p83, %s84, %s85
    %p89 = pneg %p83
    %p90 = scmp.eq.s32.totalorder %s8, 1
    %p91 = por %p89, %p90
    %p92 = scmp.ne.s32.totalorder %s84, %s87
    %p93 = scmp.eq.s32.totalorder %s8, 0
    %p94 = por %p92, %p93
    %p95 = scmp.ne.s32.totalorder %s84, %s87
    %p96 = scmp.eq.s32.totalorder %s13, 1
    %p97 = por %p95, %p96
    %p98 = scmp.ne.s32.totalorder %s87, %s88
    %p99 = scmp.eq.s32.totalorder %s13, 0
    %p100 = por %p98, %p99
    %p101 = scmp.ne.s32.totalorder %s87, %s88
    %p102 = scmp.eq.s32.totalorder %s14, 1
    %p103 = por %p101, %p102
    %p105 = scmp.ne.s32.totalorder %s88, %s104
    %p106 = scmp.eq.s32.totalorder %s14, 0
    %p107 = por %p105, %p106
    %p108 = scmp.le.s32.totalorder 1, %s8
    %p109 = scmp.lt.s32.totalorder %s8, 3
    %p110 = pnand %p108, %p109
    %p111 = pneg %p110
    // Predicated region
    $region9: #{td_layer_conv2d.1} parent=5 // pred_check
      _
    $region10: #{td_layer_conv2d.1} parent=5 // pred_check_branch
      %113 = sbr.rel (%p110) target = $region12
    $region11: #{td_layer_conv2d.1} parent=5 // pred_region
      %s114 = ssub.s32 %s8, 1
      // Predicated region
      $region13: #{td_layer_conv2d.1} parent=11 // pred_check
        %p115 = pneg %p46
      $region14: #{td_layer_conv2d.1} parent=11 // pred_check_branch
        %117 = sbr.rel (%p115) target = $region16
      $region15: #{td_layer_conv2d.1} parent=11 // pred_region
        %p118 = scmp.lt.s32.totalorder %s18, 0
        %s119 = scalar_select %p118, %s18, 0
        %s120 = smul.addr %s119, 4
        %s121 = scalar_lea.vmem %s0, %s120
      $region16: #{td_layer_conv2d.1} parent=11 // pred_fallthru
        _
    $region12: #{td_layer_conv2d.1} parent=5 // pred_fallthru
      _
    %p122 = scmp.lt.s32.totalorder %s8, 2
    // Predicated region
    $region17: #{td_layer_conv2d.1} parent=5 // pred_check
      %p123 = pneg %p122
    $region18: #{td_layer_conv2d.1} parent=5 // pred_check_branch
      %125 = sbr.rel (%p123) target = $region20
    $region19: #{td_layer_conv2d.1} parent=5 // pred_region
      // Predicated region
      $region21: #{td_layer_conv2d.1} parent=19 // pred_check
        %p126 = pneg %p66
      $region22: #{td_layer_conv2d.1} parent=19 // pred_check_branch
        %128 = sbr.rel (%p126) target = $region24
      $region23: #{td_layer_conv2d.1} parent=19 // pred_region
        %p129 = scmp.lt.s32.totalorder %s15, 1
        %s130 = scalar_select %p129, %s15, 1
        %s131 = smul.addr %s130, 36
        %s132 = smul.addr %s131, 4
        %s133 = scalar_lea.vmem %s1, %s132
      $region24: #{td_layer_conv2d.1} parent=19 // pred_fallthru
        _
    $region20: #{td_layer_conv2d.1} parent=5 // pred_fallthru
      _
    %p134 = scmp.le.s32.totalorder 1, %s8
    %p135 = scmp.lt.s32.totalorder %s8, 3
    %p136 = pnand %p134, %p135
    %p137 = pneg %p136
    // Predicated region
    $region25: #{td_layer_conv2d.1} parent=5 // pred_check
      _
    $region26: #{td_layer_conv2d.1} parent=5 // pred_check_branch
      %139 = sbr.rel (%p136) target = $region28
    $region27: #{td_layer_conv2d.1} parent=5 // pred_region
      %s140 = ssub.s32 %s8, 1
      %p141 = scmp.lt.s32.totalorder %s18, 0
      %s142 = scalar_select %p141, %s18, 0
      %s143 = smul.addr %s142, 4
      %s144 = scalar_lea.vmem %s0, %s143
      %p145 = pneg %p46
      %p146 = pneg %p43
      %p147 = scmp.lt.s32.totalorder %s17, 1
      %s148 = scalar_select %p147, %s17, 1
      %s149 = smul.addr %s148, 36
      %s150 = smul.addr %s149, 4
      %s151 = scalar_lea.vmem %s1, %s150
      %p152 = pneg %p72
      %p153 = pneg %p69
      %p154 = pneg %p100
      %p155 = pneg %p97
      %p156 = scmp.lt.s32.totalorder %s17, 1
      %s157 = scalar_select %p156, %s17, 1
      %p158 = scmp.lt.s32.totalorder %s18, 0
      %s159 = scalar_select %p158, %s18, 0
      %s160 = smul.addr %s159, 16
      %s161 = smul.addr %s157, 16
      %s162 = sadd.s32 %s160, %s161
      %s163 = smul.addr %s162, 8
      %s164 = scalar_lea.vmem %s2, %s163
      %p165 = scmp.lt.s32.totalorder %s18, 0
      %s166 = scalar_select %p165, %s18, 0
      %s167 = smul.addr %s166, 4
      %s168 = scalar_lea.vmem %s0, %s167
      %p169 = scmp.lt.s32.totalorder %s17, 1
      %s170 = scalar_select %p169, %s17, 1
      %s171 = smul.addr %s170, 36
      %s172 = smul.addr %s171, 4
      %s173 = scalar_lea.vmem %s1, %s172
      %p174 = scmp.lt.s32.totalorder %s17, 1
      %s175 = scalar_select %p174, %s17, 1
      %p176 = scmp.lt.s32.totalorder %s18, 0
      %s177 = scalar_select %p176, %s18, 0
      %s178 = smul.addr %s177, 16
      %s179 = smul.addr %s175, 16
      %s180 = sadd.s32 %s178, %s179
      %s181 = smul.addr %s180, 8
      %s182 = scalar_lea.vmem %s2, %s181
      %v184 = vld [vmem:[%s168] sm:$0xf]
      %v185 = vld [vmem:[%s173] sm:$0xff]
      %v186 = vld [vmem:[%s173 + $0x8] sm:$0xff]
      %v187 = vld [vmem:[%s173 + $0x10] sm:$0xff]
      %v188 = vld [vmem:[%s173 + $0x18] sm:$0xff]
      %v189 = vld [vmem:[%s173 + $0x20] sm:$0xff]
      %v190 = vld [vmem:[%s173 + $0x28] sm:$0xff]
      %v191 = vld [vmem:[%s173 + $0x30] sm:$0xff]
      %v192 = vld [vmem:[%s173 + $0x38] sm:$0xff]
      %v193 = vld [vmem:[%s173 + $0x48] sm:$0x33]
      %v194 = vld [vmem:[%s173 + $0x50] sm:$0x33]
      %v195 = vld [vmem:[%s173 + $0x58] sm:$0x33]
      %v196 = vld [vmem:[%s173 + $0x60] sm:$0x33]
      %v197 = vld [vmem:[%s173 + $0x68] sm:$0x33]
      %v198 = vld [vmem:[%s173 + $0x70] sm:$0x33]
      %v199 = vld [vmem:[%s173 + $0x78] sm:$0x33]
      %v200 = vld [vmem:[%s173 + $0x80] sm:$0x33]
      %s201 = scalar_lea.vmem %s168, 4
      %v202 = vld [vmem:[%s201] sm:$0xf]
      %v203 = vld [vmem:[%s173 + $0x4] sm:$0xff]
      %v204 = vld [vmem:[%s173 + $0xc] sm:$0xff]
      %v205 = vld [vmem:[%s173 + $0x14] sm:$0xff]
      %v206 = vld [vmem:[%s173 + $0x1c] sm:$0xff]
      %v207 = vld [vmem:[%s173 + $0x24] sm:$0xff]
      %v208 = vld [vmem:[%s173 + $0x2c] sm:$0xff]
      %v209 = vld [vmem:[%s173 + $0x34] sm:$0xff]
      %v210 = vld [vmem:[%s173 + $0x3c] sm:$0xff]
      %v211 = vld [vmem:[%s173 + $0x4c] sm:$0x33]
      %v212 = vld [vmem:[%s173 + $0x54] sm:$0x33]
      %v213 = vld [vmem:[%s173 + $0x5c] sm:$0x33]
      %v214 = vld [vmem:[%s173 + $0x64] sm:$0x33]
      %v215 = vld [vmem:[%s173 + $0x6c] sm:$0x33]
      %v216 = vld [vmem:[%s173 + $0x74] sm:$0x33]
      %v217 = vld [vmem:[%s173 + $0x7c] sm:$0x33]
      %v218 = vld [vmem:[%s173 + $0x84] sm:$0x33]
      %v235 = vunpack.c.l.b16 %v203
      %v236 = vunpack.c.h.b16 %v203
      %v237 = vunpack.c.l.b16 %v204
      %v238 = vunpack.c.h.b16 %v204
      %v239 = vunpack.c.l.b16 %v205
      %v240 = vunpack.c.h.b16 %v205
      %v241 = vunpack.c.l.b16 %v206
      %v242 = vunpack.c.h.b16 %v206
      %v243 = vunpack.c.l.b16 %v207
      %v244 = vunpack.c.h.b16 %v207
      %v245 = vunpack.c.l.b16 %v208
      %v246 = vunpack.c.h.b16 %v208
      %v247 = vunpack.c.l.b16 %v209
      %v248 = vunpack.c.h.b16 %v209
      %v249 = vunpack.c.l.b16 %v210
      %v250 = vunpack.c.h.b16 %v210
      %v251 = vunpack.c.l.b16 %v211
      %v252 = vunpack.c.h.b16 %v211
      %v253 = vunpack.c.l.b16 %v212
      %v254 = vunpack.c.h.b16 %v212
      %v255 = vunpack.c.l.b16 %v213
      %v256 = vunpack.c.h.b16 %v213
      %v257 = vunpack.c.l.b16 %v214
      %v258 = vunpack.c.h.b16 %v214
      %v259 = vunpack.c.l.b16 %v215
      %v260 = vunpack.c.h.b16 %v215
      %v261 = vunpack.c.l.b16 %v216
      %v262 = vunpack.c.h.b16 %v216
      %v263 = vunpack.c.l.b16 %v217
      %v264 = vunpack.c.h.b16 %v217
      %v265 = vunpack.c.l.b16 %v218
      %v266 = vunpack.c.h.b16 %v218
      %v267 = vpack.c.b16 %v251, %v235
      %v268 = vpack.c.b16 %v252, %v236
      %v269 = vpack.c.b16 %v253, %v237
      %v270 = vpack.c.b16 %v254, %v238
      %v271 = vpack.c.b16 %v255, %v239
      %v272 = vpack.c.b16 %v256, %v240
      %v273 = vpack.c.b16 %v257, %v241
      %v274 = vpack.c.b16 %v258, %v242
      %v275 = vpack.c.b16 %v259, %v243
      %v276 = vpack.c.b16 %v260, %v244
      %v277 = vpack.c.b16 %v261, %v245
      %v278 = vpack.c.b16 %v262, %v246
      %v279 = vpack.c.b16 %v263, %v247
      %v280 = vpack.c.b16 %v264, %v248
      %v281 = vpack.c.b16 %v265, %v249
      %v282 = vpack.c.b16 %v266, %v250
      %vm283 = vcmask 97280
      %v285 = vsel %vm283, %v202, 0
      %vm287 = vcmask 1045504
      %v289 = vsel %vm287, %v267, 0
      %v292 = vsel %vm287, %v268, 0
      %v295 = vsel %vm287, %v269, 0
      %v298 = vsel %vm287, %v270, 0
      %v301 = vsel %vm287, %v271, 0
      %v304 = vsel %vm287, %v272, 0
      %v307 = vsel %vm287, %v273, 0
      %v310 = vsel %vm287, %v274, 0
      %v313 = vsel %vm287, %v275, 0
      %v316 = vsel %vm287, %v276, 0
      %v319 = vsel %vm287, %v277, 0
      %v322 = vsel %vm287, %v278, 0
      %v325 = vsel %vm287, %v279, 0
      %v328 = vsel %vm287, %v280, 0
      %v331 = vsel %vm287, %v281, 0
      %v334 = vsel %vm287, %v282, 0
      %336 = vmatprep.subr.bf16.mxu0 0
      %337 = vmatpush1.bf16.msra.mxu0 0
      %338 = vmatprep.subr.bf16.mxu0 0
      %339 = vmatpush1.bf16.msra.mxu0 0
      %340 = vmatprep.subr.bf16.mxu0 0
      %341 = vmatpush1.bf16.msra.mxu0 0
      %342 = vmatprep.subr.bf16.mxu0 0
      %343 = vmatpush1.bf16.msra.mxu0 0
      %344 = vmatprep.subr.bf16.mxu0 0
      %345 = vmatpush1.bf16.msra.mxu0 0
      %346 = vmatprep.subr.bf16.mxu0 0
      %347 = vmatpush1.bf16.msra.mxu0 0
      %348 = vmatprep.subr.bf16.mxu0 0
      %349 = vmatpush1.bf16.msra.mxu0 0
      %350 = vmatprep.subr.bf16.mxu0 %v292
      %351 = vmatpush1.bf16.msra.mxu0 %v289
      %352 = vmatprep.subr.bf16.mxu0 0
      %353 = vmatpush2.bf16.msra.mxu0 0
      %354 = vmatprep.subr.bf16.mxu0 0
      %355 = vmatpush2.bf16.msra.mxu0 0
      %356 = vmatprep.subr.bf16.mxu0 0
      %357 = vmatpush2.bf16.msra.mxu0 0
      %358 = vmatprep.subr.bf16.mxu0 0
      %359 = vmatpush2.bf16.msra.mxu0 0
      %360 = vmatprep.subr.bf16.mxu0 0
      %361 = vmatpush2.bf16.msra.mxu0 0
      %362 = vmatprep.subr.bf16.mxu0 0
      %363 = vmatpush2.bf16.msra.mxu0 0
      %364 = vmatprep.subr.bf16.mxu0 0
      %365 = vmatpush2.bf16.msra.mxu0 0
      %366 = vmatprep.subr.bf16.mxu0 0
      %367 = vmatpush2.bf16.msra.mxu0 0
      %368 = vmatprep.mubr.bf16.mxu0 0
      %369 = vmatmul.mubr.bf16.gmra.mxu0 %v285
      %v370 = vpop.f32.mrf.mxu0
      %v371 = vadd.f32 0.0, %v370
      %v372 = vpop.f32.mrf.mxu0
      %v373 = vadd.f32 0.0, %v372
      %v374 = vpop.f32.mrf.mxu0
      %v375 = vpop.f32.mrf.mxu0
      %376 = vdwg.mxu0
      %377 = vmatprep.subr.bf16.mxu0 0
      %378 = vmatpush1.bf16.msra.mxu0 0
      %379 = vmatprep.subr.bf16.mxu0 0
      %380 = vmatpush1.bf16.msra.mxu0 0
      %381 = vmatprep.subr.bf16.mxu0 0
      %382 = vmatpush1.bf16.msra.mxu0 0
      %383 = vmatprep.subr.bf16.mxu0 0
      %384 = vmatpush1.bf16.msra.mxu0 0
      %385 = vmatprep.subr.bf16.mxu0 0
      %386 = vmatpush1.bf16.msra.mxu0 0
      %387 = vmatprep.subr.bf16.mxu0 0
      %388 = vmatpush1.bf16.msra.mxu0 0
      %389 = vmatprep.subr.bf16.mxu0 0
      %390 = vmatpush1.bf16.msra.mxu0 0
      %391 = vmatprep.subr.bf16.mxu0 %v298
      %392 = vmatpush1.bf16.msra.mxu0 %v295
      %393 = vmatprep.subr.bf16.mxu0 0
      %394 = vmatpush2.bf16.msra.mxu0 0
      %395 = vmatprep.subr.bf16.mxu0 0
      %396 = vmatpush2.bf16.msra.mxu0 0
      %397 = vmatprep.subr.bf16.mxu0 0
      %398 = vmatpush2.bf16.msra.mxu0 0
      %399 = vmatprep.subr.bf16.mxu0 0
      %400 = vmatpush2.bf16.msra.mxu0 0
      %401 = vmatprep.subr.bf16.mxu0 0
      %402 = vmatpush2.bf16.msra.mxu0 0
      %403 = vmatprep.subr.bf16.mxu0 0
      %404 = vmatpush2.bf16.msra.mxu0 0
      %405 = vmatprep.subr.bf16.mxu0 0
      %406 = vmatpush2.bf16.msra.mxu0 0
      %407 = vmatprep.subr.bf16.mxu0 0
      %408 = vmatpush2.bf16.msra.mxu0 0
      %409 = vmatprep.mubr.bf16.mxu0 0
      %410 = vmatmul.mubr.bf16.gmra.mxu0 %v285
      %v411 = vpop.f32.mrf.mxu0
      %v412 = vadd.f32 0.0, %v411
      %v413 = vpop.f32.mrf.mxu0
      %v414 = vadd.f32 0.0, %v413
      %v415 = vpop.f32.mrf.mxu0
      %v416 = vpop.f32.mrf.mxu0
      %417 = vdwg.mxu0
      %418 = vmatprep.subr.bf16.mxu0 0
      %419 = vmatpush1.bf16.msra.mxu0 0
      %420 = vmatprep.subr.bf16.mxu0 0
      %421 = vmatpush1.bf16.msra.mxu0 0
      %422 = vmatprep.subr.bf16.mxu0 0
      %423 = vmatpush1.bf16.msra.mxu0 0
      %424 = vmatprep.subr.bf16.mxu0 0
      %425 = vmatpush1.bf16.msra.mxu0 0
      %426 = vmatprep.subr.bf16.mxu0 0
      %427 = vmatpush1.bf16.msra.mxu0 0
      %428 = vmatprep.subr.bf16.mxu0 0
      %429 = vmatpush1.bf16.msra.mxu0 0
      %430 = vmatprep.subr.bf16.mxu0 0
      %431 = vmatpush1.bf16.msra.mxu0 0
      %432 = vmatprep.subr.bf16.mxu0 %v304
      %433 = vmatpush1.bf16.msra.mxu0 %v301
      %434 = vmatprep.subr.bf16.mxu0 0
      %435 = vmatpush2.bf16.msra.mxu0 0
      %436 = vmatprep.subr.bf16.mxu0 0
      %437 = vmatpush2.bf16.msra.mxu0 0
      %438 = vmatprep.subr.bf16.mxu0 0
      %439 = vmatpush2.bf16.msra.mxu0 0
      %440 = vmatprep.subr.bf16.mxu0 0
      %441 = vmatpush2.bf16.msra.mxu0 0
      %442 = vmatprep.subr.bf16.mxu0 0
      %443 = vmatpush2.bf16.msra.mxu0 0
      %444 = vmatprep.subr.bf16.mxu0 0
      %445 = vmatpush2.bf16.msra.mxu0 0
      %446 = vmatprep.subr.bf16.mxu0 0
      %447 = vmatpush2.bf16.msra.mxu0 0
      %448 = vmatprep.subr.bf16.mxu0 0
      %449 = vmatpush2.bf16.msra.mxu0 0
      %450 = vmatprep.mubr.bf16.mxu0 0
      %451 = vmatmul.mubr.bf16.gmra.mxu0 %v285
      %v452 = vpop.f32.mrf.mxu0
      %v453 = vadd.f32 0.0, %v452
      %v454 = vpop.f32.mrf.mxu0
      %v455 = vadd.f32 0.0, %v454
      %v456 = vpop.f32.mrf.mxu0
      %v457 = vpop.f32.mrf.mxu0
      %458 = vdwg.mxu0
      %459 = vmatprep.subr.bf16.mxu0 0
      %460 = vmatpush1.bf16.msra.mxu0 0
      %461 = vmatprep.subr.bf16.mxu0 0
      %462 = vmatpush1.bf16.msra.mxu0 0
      %463 = vmatprep.subr.bf16.mxu0 0
      %464 = vmatpush1.bf16.msra.mxu0 0
      %465 = vmatprep.subr.bf16.mxu0 0
      %466 = vmatpush1.bf16.msra.mxu0 0
      %467 = vmatprep.subr.bf16.mxu0 0
      %468 = vmatpush1.bf16.msra.mxu0 0
      %469 = vmatprep.subr.bf16.mxu0 0
      %470 = vmatpush1.bf16.msra.mxu0 0
      %471 = vmatprep.subr.bf16.mxu0 0
      %472 = vmatpush1.bf16.msra.mxu0 0
      %473 = vmatprep.subr.bf16.mxu0 %v310
      %474 = vmatpush1.bf16.msra.mxu0 %v307
      %475 = vmatprep.subr.bf16.mxu0 0
      %476 = vmatpush2.bf16.msra.mxu0 0
      %477 = vmatprep.subr.bf16.mxu0 0
      %478 = vmatpush2.bf16.msra.mxu0 0
      %479 = vmatprep.subr.bf16.mxu0 0
      %480 = vmatpush2.bf16.msra.mxu0 0
      %481 = vmatprep.subr.bf16.mxu0 0
      %482 = vmatpush2.bf16.msra.mxu0 0
      %483 = vmatprep.subr.bf16.mxu0 0
      %484 = vmatpush2.bf16.msra.mxu0 0
      %485 = vmatprep.subr.bf16.mxu0 0
      %486 = vmatpush2.bf16.msra.mxu0 0
      %487 = vmatprep.subr.bf16.mxu0 0
      %488 = vmatpush2.bf16.msra.mxu0 0
      %489 = vmatprep.subr.bf16.mxu0 0
      %490 = vmatpush2.bf16.msra.mxu0 0
      %491 = vmatprep.mubr.bf16.mxu0 0
      %492 = vmatmul.mubr.bf16.gmra.mxu0 %v285
      %v493 = vpop.f32.mrf.mxu0
      %v494 = vadd.f32 0.0, %v493
      %v495 = vpop.f32.mrf.mxu0
      %v496 = vadd.f32 0.0, %v495
      %v497 = vpop.f32.mrf.mxu0
      %v498 = vpop.f32.mrf.mxu0
      %499 = vdwg.mxu0
      %500 = vmatprep.subr.bf16.mxu0 0
      %501 = vmatpush1.bf16.msra.mxu0 0
      %502 = vmatprep.subr.bf16.mxu0 0
      %503 = vmatpush1.bf16.msra.mxu0 0
      %504 = vmatprep.subr.bf16.mxu0 0
      %505 = vmatpush1.bf16.msra.mxu0 0
      %506 = vmatprep.subr.bf16.mxu0 0
      %507 = vmatpush1.bf16.msra.mxu0 0
      %508 = vmatprep.subr.bf16.mxu0 0
      %509 = vmatpush1.bf16.msra.mxu0 0
      %510 = vmatprep.subr.bf16.mxu0 0
      %511 = vmatpush1.bf16.msra.mxu0 0
      %512 = vmatprep.subr.bf16.mxu0 0
      %513 = vmatpush1.bf16.msra.mxu0 0
      %514 = vmatprep.subr.bf16.mxu0 %v316
      %515 = vmatpush1.bf16.msra.mxu0 %v313
      %516 = vmatprep.subr.bf16.mxu0 0
      %517 = vmatpush2.bf16.msra.mxu0 0
      %518 = vmatprep.subr.bf16.mxu0 0
      %519 = vmatpush2.bf16.msra.mxu0 0
      %520 = vmatprep.subr.bf16.mxu0 0
      %521 = vmatpush2.bf16.msra.mxu0 0
      %522 = vmatprep.subr.bf16.mxu0 0
      %523 = vmatpush2.bf16.msra.mxu0 0
      %524 = vmatprep.subr.bf16.mxu0 0
      %525 = vmatpush2.bf16.msra.mxu0 0
      %526 = vmatprep.subr.bf16.mxu0 0
      %527 = vmatpush2.bf16.msra.mxu0 0
      %528 = vmatprep.subr.bf16.mxu0 0
      %529 = vmatpush2.bf16.msra.mxu0 0
      %530 = vmatprep.subr.bf16.mxu0 0
      %531 = vmatpush2.bf16.msra.mxu0 0
      %532 = vmatprep.mubr.bf16.mxu0 0
      %533 = vmatmul.mubr.bf16.gmra.mxu0 %v285
      %v534 = vpop.f32.mrf.mxu0
      %v535 = vadd.f32 0.0, %v534
      %v536 = vpop.f32.mrf.mxu0
      %v537 = vadd.f32 0.0, %v536
      %v538 = vpop.f32.mrf.mxu0
      %v539 = vpop.f32.mrf.mxu0
      %540 = vdwg.mxu0
      %541 = vmatprep.subr.bf16.mxu0 0
      %542 = vmatpush1.bf16.msra.mxu0 0
      %543 = vmatprep.subr.bf16.mxu0 0
      %544 = vmatpush1.bf16.msra.mxu0 0
      %545 = vmatprep.subr.bf16.mxu0 0
      %546 = vmatpush1.bf16.msra.mxu0 0
      %547 = vmatprep.subr.bf16.mxu0 0
      %548 = vmatpush1.bf16.msra.mxu0 0
      %549 = vmatprep.subr.bf16.mxu0 0
      %550 = vmatpush1.bf16.msra.mxu0 0
      %551 = vmatprep.subr.bf16.mxu0 0
      %552 = vmatpush1.bf16.msra.mxu0 0
      %553 = vmatprep.subr.bf16.mxu0 0
      %554 = vmatpush1.bf16.msra.mxu0 0
      %555 = vmatprep.subr.bf16.mxu0 %v322
      %556 = vmatpush1.bf16.msra.mxu0 %v319
      %557 = vmatprep.subr.bf16.mxu0 0
      %558 = vmatpush2.bf16.msra.mxu0 0
      %559 = vmatprep.subr.bf16.mxu0 0
      %560 = vmatpush2.bf16.msra.mxu0 0
      %561 = vmatprep.subr.bf16.mxu0 0
      %562 = vmatpush2.bf16.msra.mxu0 0
      %563 = vmatprep.subr.bf16.mxu0 0
      %564 = vmatpush2.bf16.msra.mxu0 0
      %565 = vmatprep.subr.bf16.mxu0 0
      %566 = vmatpush2.bf16.msra.mxu0 0
      %567 = vmatprep.subr.bf16.mxu0 0
      %568 = vmatpush2.bf16.msra.mxu0 0
      %569 = vmatprep.subr.bf16.mxu0 0
      %570 = vmatpush2.bf16.msra.mxu0 0
      %571 = vmatprep.subr.bf16.mxu0 0
      %572 = vmatpush2.bf16.msra.mxu0 0
      %573 = vmatprep.mubr.bf16.mxu0 0
      %574 = vmatmul.mubr.bf16.gmra.mxu0 %v285
      %v575 = vpop.f32.mrf.mxu0
      %v576 = vadd.f32 0.0, %v575
      %v577 = vpop.f32.mrf.mxu0
      %v578 = vadd.f32 0.0, %v577
      %v579 = vpop.f32.mrf.mxu0
      %v580 = vpop.f32.mrf.mxu0
      %581 = vdwg.mxu0
      %582 = vmatprep.subr.bf16.mxu0 0
      %583 = vmatpush1.bf16.msra.mxu0 0
      %584 = vmatprep.subr.bf16.mxu0 0
      %585 = vmatpush1.bf16.msra.mxu0 0
      %586 = vmatprep.subr.bf16.mxu0 0
      %587 = vmatpush1.bf16.msra.mxu0 0
      %588 = vmatprep.subr.bf16.mxu0 0
      %589 = vmatpush1.bf16.msra.mxu0 0
      %590 = vmatprep.subr.bf16.mxu0 0
      %591 = vmatpush1.bf16.msra.mxu0 0
      %592 = vmatprep.subr.bf16.mxu0 0
      %593 = vmatpush1.bf16.msra.mxu0 0
      %594 = vmatprep.subr.bf16.mxu0 0
      %595 = vmatpush1.bf16.msra.mxu0 0
      %596 = vmatprep.subr.bf16.mxu0 %v328
      %597 = vmatpush1.bf16.msra.mxu0 %v325
      %598 = vmatprep.subr.bf16.mxu0 0
      %599 = vmatpush2.bf16.msra.mxu0 0
      %600 = vmatprep.subr.bf16.mxu0 0
      %601 = vmatpush2.bf16.msra.mxu0 0
      %602 = vmatprep.subr.bf16.mxu0 0
      %603 = vmatpush2.bf16.msra.mxu0 0
      %604 = vmatprep.subr.bf16.mxu0 0
      %605 = vmatpush2.bf16.msra.mxu0 0
      %606 = vmatprep.subr.bf16.mxu0 0
      %607 = vmatpush2.bf16.msra.mxu0 0
      %608 = vmatprep.subr.bf16.mxu0 0
      %609 = vmatpush2.bf16.msra.mxu0 0
      %610 = vmatprep.subr.bf16.mxu0 0
      %611 = vmatpush2.bf16.msra.mxu0 0
      %612 = vmatprep.subr.bf16.mxu0 0
      %613 = vmatpush2.bf16.msra.mxu0 0
      %614 = vmatprep.mubr.bf16.mxu0 0
      %615 = vmatmul.mubr.bf16.gmra.mxu0 %v285
      %v616 = vpop.f32.mrf.mxu0
      %v617 = vadd.f32 0.0, %v616
      %v618 = vpop.f32.mrf.mxu0
      %v619 = vadd.f32 0.0, %v618
      %v620 = vpop.f32.mrf.mxu0
      %v621 = vpop.f32.mrf.mxu0
      %622 = vdwg.mxu0
      %623 = vmatprep.subr.bf16.mxu0 0
      %624 = vmatpush1.bf16.msra.mxu0 0
      %625 = vmatprep.subr.bf16.mxu0 0
      %626 = vmatpush1.bf16.msra.mxu0 0
      %627 = vmatprep.subr.bf16.mxu0 0
      %628 = vmatpush1.bf16.msra.mxu0 0
      %629 = vmatprep.subr.bf16.mxu0 0
      %630 = vmatpush1.bf16.msra.mxu0 0
      %631 = vmatprep.subr.bf16.mxu0 0
      %632 = vmatpush1.bf16.msra.mxu0 0
      %633 = vmatprep.subr.bf16.mxu0 0
      %634 = vmatpush1.bf16.msra.mxu0 0
      %635 = vmatprep.subr.bf16.mxu0 0
      %636 = vmatpush1.bf16.msra.mxu0 0
      %637 = vmatprep.subr.bf16.mxu0 %v334
      %638 = vmatpush1.bf16.msra.mxu0 %v331
      %639 = vmatprep.subr.bf16.mxu0 0
      %640 = vmatpush2.bf16.msra.mxu0 0
      %641 = vmatprep.subr.bf16.mxu0 0
      %642 = vmatpush2.bf16.msra.mxu0 0
      %643 = vmatprep.subr.bf16.mxu0 0
      %644 = vmatpush2.bf16.msra.mxu0 0
      %645 = vmatprep.subr.bf16.mxu0 0
      %646 = vmatpush2.bf16.msra.mxu0 0
      %647 = vmatprep.subr.bf16.mxu0 0
      %648 = vmatpush2.bf16.msra.mxu0 0
      %649 = vmatprep.subr.bf16.mxu0 0
      %650 = vmatpush2.bf16.msra.mxu0 0
      %651 = vmatprep.subr.bf16.mxu0 0
      %652 = vmatpush2.bf16.msra.mxu0 0
      %653 = vmatprep.subr.bf16.mxu0 0
      %654 = vmatpush2.bf16.msra.mxu0 0
      %655 = vmatprep.mubr.bf16.mxu0 0
      %656 = vmatmul.mubr.bf16.gmra.mxu0 %v285
      %v657 = vpop.f32.mrf.mxu0
      %v658 = vadd.f32 0.0, %v657
      %v659 = vpop.f32.mrf.mxu0
      %v660 = vadd.f32 0.0, %v659
      %v661 = vpop.f32.mrf.mxu0
      %v662 = vpop.f32.mrf.mxu0
      %663 = vdwg.mxu0
      %v680 = vunpack.c.l.b16 %v185
      %v681 = vunpack.c.h.b16 %v185
      %v682 = vunpack.c.l.b16 %v186
      %v683 = vunpack.c.h.b16 %v186
      %v684 = vunpack.c.l.b16 %v187
      %v685 = vunpack.c.h.b16 %v187
      %v686 = vunpack.c.l.b16 %v188
      %v687 = vunpack.c.h.b16 %v188
      %v688 = vunpack.c.l.b16 %v189
      %v689 = vunpack.c.h.b16 %v189
      %v690 = vunpack.c.l.b16 %v190
      %v691 = vunpack.c.h.b16 %v190
      %v692 = vunpack.c.l.b16 %v191
      %v693 = vunpack.c.h.b16 %v191
      %v694 = vunpack.c.l.b16 %v192
      %v695 = vunpack.c.h.b16 %v192
      %v696 = vunpack.c.l.b16 %v193
      %v697 = vunpack.c.h.b16 %v193
      %v698 = vunpack.c.l.b16 %v194
      %v699 = vunpack.c.h.b16 %v194
      %v700 = vunpack.c.l.b16 %v195
      %v701 = vunpack.c.h.b16 %v195
      %v702 = vunpack.c.l.b16 %v196
      %v703 = vunpack.c.h.b16 %v196
      %v704 = vunpack.c.l.b16 %v197
      %v705 = vunpack.c.h.b16 %v197
      %v706 = vunpack.c.l.b16 %v198
      %v707 = vunpack.c.h.b16 %v198
      %v708 = vunpack.c.l.b16 %v199
      %v709 = vunpack.c.h.b16 %v199
      %v710 = vunpack.c.l.b16 %v200
      %v711 = vunpack.c.h.b16 %v200
      %v712 = vpack.c.b16 %v696, %v680
      %v713 = vpack.c.b16 %v697, %v681
      %v714 = vpack.c.b16 %v698, %v682
      %v715 = vpack.c.b16 %v699, %v683
      %v716 = vpack.c.b16 %v700, %v684
      %v717 = vpack.c.b16 %v701, %v685
      %v718 = vpack.c.b16 %v702, %v686
      %v719 = vpack.c.b16 %v703, %v687
      %v720 = vpack.c.b16 %v704, %v688
      %v721 = vpack.c.b16 %v705, %v689
      %v722 = vpack.c.b16 %v706, %v690
      %v723 = vpack.c.b16 %v707, %v691
      %v724 = vpack.c.b16 %v708, %v692
      %v725 = vpack.c.b16 %v709, %v693
      %v726 = vpack.c.b16 %v710, %v694
      %v727 = vpack.c.b16 %v711, %v695
      %v729 = vsel %vm283, %v184, 0
      %v732 = vsel %vm287, %v712, 0
      %v735 = vsel %vm287, %v713, 0
      %v738 = vsel %vm287, %v714, 0
      %v741 = vsel %vm287, %v715, 0
      %v744 = vsel %vm287, %v716, 0
      %v747 = vsel %vm287, %v717, 0
      %v750 = vsel %vm287, %v718, 0
      %v753 = vsel %vm287, %v719, 0
      %v756 = vsel %vm287, %v720, 0
      %v759 = vsel %vm287, %v721, 0
      %v762 = vsel %vm287, %v722, 0
      %v765 = vsel %vm287, %v723, 0
      %v768 = vsel %vm287, %v724, 0
      %v771 = vsel %vm287, %v725, 0
      %v774 = vsel %vm287, %v726, 0
      %v777 = vsel %vm287, %v727, 0
      %779 = vmatprep.subr.bf16.mxu0 0
      %780 = vmatpush1.bf16.msra.mxu0 0
      %781 = vmatprep.subr.bf16.mxu0 0
      %782 = vmatpush1.bf16.msra.mxu0 0
      %783 = vmatprep.subr.bf16.mxu0 0
      %784 = vmatpush1.bf16.msra.mxu0 0
      %785 = vmatprep.subr.bf16.mxu0 0
      %786 = vmatpush1.bf16.msra.mxu0 0
      %787 = vmatprep.subr.bf16.mxu0 0
      %788 = vmatpush1.bf16.msra.mxu0 0
      %789 = vmatprep.subr.bf16.mxu0 0
      %790 = vmatpush1.bf16.msra.mxu0 0
      %791 = vmatprep.subr.bf16.mxu0 0
      %792 = vmatpush1.bf16.msra.mxu0 0
      %793 = vmatprep.subr.bf16.mxu0 %v735
      %794 = vmatpush1.bf16.msra.mxu0 %v732
      %795 = vmatprep.subr.bf16.mxu0 0
      %796 = vmatpush2.bf16.msra.mxu0 0
      %797 = vmatprep.subr.bf16.mxu0 0
      %798 = vmatpush2.bf16.msra.mxu0 0
      %799 = vmatprep.subr.bf16.mxu0 0
      %800 = vmatpush2.bf16.msra.mxu0 0
      %801 = vmatprep.subr.bf16.mxu0 0
      %802 = vmatpush2.bf16.msra.mxu0 0
      %803 = vmatprep.subr.bf16.mxu0 0
      %804 = vmatpush2.bf16.msra.mxu0 0
      %805 = vmatprep.subr.bf16.mxu0 0
      %806 = vmatpush2.bf16.msra.mxu0 0
      %807 = vmatprep.subr.bf16.mxu0 0
      %808 = vmatpush2.bf16.msra.mxu0 0
      %809 = vmatprep.subr.bf16.mxu0 0
      %810 = vmatpush2.bf16.msra.mxu0 0
      %811 = vmatprep.mubr.bf16.mxu0 0
      %812 = vmatmul.mubr.bf16.gmra.mxu0 %v729
      %v813 = vpop.f32.mrf.mxu0
      %v814 = vadd.f32 %v371, %v813
      %v815 = vpop.f32.mrf.mxu0
      %v816 = vadd.f32 %v373, %v815
      %v817 = vpop.f32.mrf.mxu0
      %v818 = vpop.f32.mrf.mxu0
      %819 = vdwg.mxu0
      %820 = vmatprep.subr.bf16.mxu0 0
      %821 = vmatpush1.bf16.msra.mxu0 0
      %822 = vmatprep.subr.bf16.mxu0 0
      %823 = vmatpush1.bf16.msra.mxu0 0
      %824 = vmatprep.subr.bf16.mxu0 0
      %825 = vmatpush1.bf16.msra.mxu0 0
      %826 = vmatprep.subr.bf16.mxu0 0
      %827 = vmatpush1.bf16.msra.mxu0 0
      %828 = vmatprep.subr.bf16.mxu0 0
      %829 = vmatpush1.bf16.msra.mxu0 0
      %830 = vmatprep.subr.bf16.mxu0 0
      %831 = vmatpush1.bf16.msra.mxu0 0
      %832 = vmatprep.subr.bf16.mxu0 0
      %833 = vmatpush1.bf16.msra.mxu0 0
      %834 = vmatprep.subr.bf16.mxu0 %v741
      %835 = vmatpush1.bf16.msra.mxu0 %v738
      %836 = vmatprep.subr.bf16.mxu0 0
      %837 = vmatpush2.bf16.msra.mxu0 0
      %838 = vmatprep.subr.bf16.mxu0 0
      %839 = vmatpush2.bf16.msra.mxu0 0
      %840 = vmatprep.subr.bf16.mxu0 0
      %841 = vmatpush2.bf16.msra.mxu0 0
      %842 = vmatprep.subr.bf16.mxu0 0
      %843 = vmatpush2.bf16.msra.mxu0 0
      %844 = vmatprep.subr.bf16.mxu0 0
      %845 = vmatpush2.bf16.msra.mxu0 0
      %846 = vmatprep.subr.bf16.mxu0 0
      %847 = vmatpush2.bf16.msra.mxu0 0
      %848 = vmatprep.subr.bf16.mxu0 0
      %849 = vmatpush2.bf16.msra.mxu0 0
      %850 = vmatprep.subr.bf16.mxu0 0
      %851 = vmatpush2.bf16.msra.mxu0 0
      %852 = vmatprep.mubr.bf16.mxu0 0
      %853 = vmatmul.mubr.bf16.gmra.mxu0 %v729
      %v854 = vpop.f32.mrf.mxu0
      %v855 = vadd.f32 %v412, %v854
      %v856 = vpop.f32.mrf.mxu0
      %v857 = vadd.f32 %v414, %v856
      %v858 = vpop.f32.mrf.mxu0
      %v859 = vpop.f32.mrf.mxu0
      %860 = vdwg.mxu0
      %861 = vmatprep.subr.bf16.mxu0 0
      %862 = vmatpush1.bf16.msra.mxu0 0
      %863 = vmatprep.subr.bf16.mxu0 0
      %864 = vmatpush1.bf16.msra.mxu0 0
      %865 = vmatprep.subr.bf16.mxu0 0
      %866 = vmatpush1.bf16.msra.mxu0 0
      %867 = vmatprep.subr.bf16.mxu0 0
      %868 = vmatpush1.bf16.msra.mxu0 0
      %869 = vmatprep.subr.bf16.mxu0 0
      %870 = vmatpush1.bf16.msra.mxu0 0
      %871 = vmatprep.subr.bf16.mxu0 0
      %872 = vmatpush1.bf16.msra.mxu0 0
      %873 = vmatprep.subr.bf16.mxu0 0
      %874 = vmatpush1.bf16.msra.mxu0 0
      %875 = vmatprep.subr.bf16.mxu0 %v747
      %876 = vmatpush1.bf16.msra.mxu0 %v744
      %877 = vmatprep.subr.bf16.mxu0 0
      %878 = vmatpush2.bf16.msra.mxu0 0
      %879 = vmatprep.subr.bf16.mxu0 0
      %880 = vmatpush2.bf16.msra.mxu0 0
      %881 = vmatprep.subr.bf16.mxu0 0
      %882 = vmatpush2.bf16.msra.mxu0 0
      %883 = vmatprep.subr.bf16.mxu0 0
      %884 = vmatpush2.bf16.msra.mxu0 0
      %885 = vmatprep.subr.bf16.mxu0 0
      %886 = vmatpush2.bf16.msra.mxu0 0
      %887 = vmatprep.subr.bf16.mxu0 0
      %888 = vmatpush2.bf16.msra.mxu0 0
      %889 = vmatprep.subr.bf16.mxu0 0
      %890 = vmatpush2.bf16.msra.mxu0 0
      %891 = vmatprep.subr.bf16.mxu0 0
      %892 = vmatpush2.bf16.msra.mxu0 0
      %893 = vmatprep.mubr.bf16.mxu0 0
      %894 = vmatmul.mubr.bf16.gmra.mxu0 %v729
      %v895 = vpop.f32.mrf.mxu0
      %v896 = vadd.f32 %v453, %v895
      %v897 = vpop.f32.mrf.mxu0
      %v898 = vadd.f32 %v455, %v897
      %v899 = vpop.f32.mrf.mxu0
      %v900 = vpop.f32.mrf.mxu0
      %901 = vdwg.mxu0
      %902 = vmatprep.subr.bf16.mxu0 0
      %903 = vmatpush1.bf16.msra.mxu0 0
      %904 = vmatprep.subr.bf16.mxu0 0
      %905 = vmatpush1.bf16.msra.mxu0 0
      %906 = vmatprep.subr.bf16.mxu0 0
      %907 = vmatpush1.bf16.msra.mxu0 0
      %908 = vmatprep.subr.bf16.mxu0 0
      %909 = vmatpush1.bf16.msra.mxu0 0
      %910 = vmatprep.subr.bf16.mxu0 0
      %911 = vmatpush1.bf16.msra.mxu0 0
      %912 = vmatprep.subr.bf16.mxu0 0
      %913 = vmatpush1.bf16.msra.mxu0 0
      %914 = vmatprep.subr.bf16.mxu0 0
      %915 = vmatpush1.bf16.msra.mxu0 0
      %916 = vmatprep.subr.bf16.mxu0 %v753
      %917 = vmatpush1.bf16.msra.mxu0 %v750
      %918 = vmatprep.subr.bf16.mxu0 0
      %919 = vmatpush2.bf16.msra.mxu0 0
      %920 = vmatprep.subr.bf16.mxu0 0
      %921 = vmatpush2.bf16.msra.mxu0 0
      %922 = vmatprep.subr.bf16.mxu0 0
      %923 = vmatpush2.bf16.msra.mxu0 0
      %924 = vmatprep.subr.bf16.mxu0 0
      %925 = vmatpush2.bf16.msra.mxu0 0
      %926 = vmatprep.subr.bf16.mxu0 0
      %927 = vmatpush2.bf16.msra.mxu0 0
      %928 = vmatprep.subr.bf16.mxu0 0
      %929 = vmatpush2.bf16.msra.mxu0 0
      %930 = vmatprep.subr.bf16.mxu0 0
      %931 = vmatpush2.bf16.msra.mxu0 0
      %932 = vmatprep.subr.bf16.mxu0 0
      %933 = vmatpush2.bf16.msra.mxu0 0
      %934 = vmatprep.mubr.bf16.mxu0 0
      %935 = vmatmul.mubr.bf16.gmra.mxu0 %v729
      %v936 = vpop.f32.mrf.mxu0
      %v937 = vadd.f32 %v494, %v936
      %v938 = vpop.f32.mrf.mxu0
      %v939 = vadd.f32 %v496, %v938
      %v940 = vpop.f32.mrf.mxu0
      %v941 = vpop.f32.mrf.mxu0
      %942 = vdwg.mxu0
      %943 = vmatprep.subr.bf16.mxu0 0
      %944 = vmatpush1.bf16.msra.mxu0 0
      %945 = vmatprep.subr.bf16.mxu0 0
      %946 = vmatpush1.bf16.msra.mxu0 0
      %947 = vmatprep.subr.bf16.mxu0 0
      %948 = vmatpush1.bf16.msra.mxu0 0
      %949 = vmatprep.subr.bf16.mxu0 0
      %950 = vmatpush1.bf16.msra.mxu0 0
      %951 = vmatprep.subr.bf16.mxu0 0
      %952 = vmatpush1.bf16.msra.mxu0 0
      %953 = vmatprep.subr.bf16.mxu0 0
      %954 = vmatpush1.bf16.msra.mxu0 0
      %955 = vmatprep.subr.bf16.mxu0 0
      %956 = vmatpush1.bf16.msra.mxu0 0
      %957 = vmatprep.subr.bf16.mxu0 %v759
      %958 = vmatpush1.bf16.msra.mxu0 %v756
      %959 = vmatprep.subr.bf16.mxu0 0
      %960 = vmatpush2.bf16.msra.mxu0 0
      %961 = vmatprep.subr.bf16.mxu0 0
      %962 = vmatpush2.bf16.msra.mxu0 0
      %963 = vmatprep.subr.bf16.mxu0 0
      %964 = vmatpush2.bf16.msra.mxu0 0
      %965 = vmatprep.subr.bf16.mxu0 0
      %966 = vmatpush2.bf16.msra.mxu0 0
      %967 = vmatprep.subr.bf16.mxu0 0
      %968 = vmatpush2.bf16.msra.mxu0 0
      %969 = vmatprep.subr.bf16.mxu0 0
      %970 = vmatpush2.bf16.msra.mxu0 0
      %971 = vmatprep.subr.bf16.mxu0 0
      %972 = vmatpush2.bf16.msra.mxu0 0
      %973 = vmatprep.subr.bf16.mxu0 0
      %974 = vmatpush2.bf16.msra.mxu0 0
      %975 = vmatprep.mubr.bf16.mxu0 0
      %976 = vmatmul.mubr.bf16.gmra.mxu0 %v729
      %v977 = vpop.f32.mrf.mxu0
      %v978 = vadd.f32 %v535, %v977
      %v979 = vpop.f32.mrf.mxu0
      %v980 = vadd.f32 %v537, %v979
      %v981 = vpop.f32.mrf.mxu0
      %v982 = vpop.f32.mrf.mxu0
      %983 = vdwg.mxu0
      %984 = vmatprep.subr.bf16.mxu0 0
      %985 = vmatpush1.bf16.msra.mxu0 0
      %986 = vmatprep.subr.bf16.mxu0 0
      %987 = vmatpush1.bf16.msra.mxu0 0
      %988 = vmatprep.subr.bf16.mxu0 0
      %989 = vmatpush1.bf16.msra.mxu0 0
      %990 = vmatprep.subr.bf16.mxu0 0
      %991 = vmatpush1.bf16.msra.mxu0 0
      %992 = vmatprep.subr.bf16.mxu0 0
      %993 = vmatpush1.bf16.msra.mxu0 0
      %994 = vmatprep.subr.bf16.mxu0 0
      %995 = vmatpush1.bf16.msra.mxu0 0
      %996 = vmatprep.subr.bf16.mxu0 0
      %997 = vmatpush1.bf16.msra.mxu0 0
      %998 = vmatprep.subr.bf16.mxu0 %v765
      %999 = vmatpush1.bf16.msra.mxu0 %v762
      %1000 = vmatprep.subr.bf16.mxu0 0
      %1001 = vmatpush2.bf16.msra.mxu0 0
      %1002 = vmatprep.subr.bf16.mxu0 0
      %1003 = vmatpush2.bf16.msra.mxu0 0
      %1004 = vmatprep.subr.bf16.mxu0 0
      %1005 = vmatpush2.bf16.msra.mxu0 0
      %1006 = vmatprep.subr.bf16.mxu0 0
      %1007 = vmatpush2.bf16.msra.mxu0 0
      %1008 = vmatprep.subr.bf16.mxu0 0
      %1009 = vmatpush2.bf16.msra.mxu0 0
      %1010 = vmatprep.subr.bf16.mxu0 0
      %1011 = vmatpush2.bf16.msra.mxu0 0
      %1012 = vmatprep.subr.bf16.mxu0 0
      %1013 = vmatpush2.bf16.msra.mxu0 0
      %1014 = vmatprep.subr.bf16.mxu0 0
      %1015 = vmatpush2.bf16.msra.mxu0 0
      %1016 = vmatprep.mubr.bf16.mxu0 0
      %1017 = vmatmul.mubr.bf16.gmra.mxu0 %v729
      %v1018 = vpop.f32.mrf.mxu0
      %v1019 = vadd.f32 %v576, %v1018
      %v1020 = vpop.f32.mrf.mxu0
      %v1021 = vadd.f32 %v578, %v1020
      %v1022 = vpop.f32.mrf.mxu0
      %v1023 = vpop.f32.mrf.mxu0
      %1024 = vdwg.mxu0
      %1025 = vmatprep.subr.bf16.mxu0 0
      %1026 = vmatpush1.bf16.msra.mxu0 0
      %1027 = vmatprep.subr.bf16.mxu0 0
      %1028 = vmatpush1.bf16.msra.mxu0 0
      %1029 = vmatprep.subr.bf16.mxu0 0
      %1030 = vmatpush1.bf16.msra.mxu0 0
      %1031 = vmatprep.subr.bf16.mxu0 0
      %1032 = vmatpush1.bf16.msra.mxu0 0
      %1033 = vmatprep.subr.bf16.mxu0 0
      %1034 = vmatpush1.bf16.msra.mxu0 0
      %1035 = vmatprep.subr.bf16.mxu0 0
      %1036 = vmatpush1.bf16.msra.mxu0 0
      %1037 = vmatprep.subr.bf16.mxu0 0
      %1038 = vmatpush1.bf16.msra.mxu0 0
      %1039 = vmatprep.subr.bf16.mxu0 %v771
      %1040 = vmatpush1.bf16.msra.mxu0 %v768
      %1041 = vmatprep.subr.bf16.mxu0 0
      %1042 = vmatpush2.bf16.msra.mxu0 0
      %1043 = vmatprep.subr.bf16.mxu0 0
      %1044 = vmatpush2.bf16.msra.mxu0 0
      %1045 = vmatprep.subr.bf16.mxu0 0
      %1046 = vmatpush2.bf16.msra.mxu0 0
      %1047 = vmatprep.subr.bf16.mxu0 0
      %1048 = vmatpush2.bf16.msra.mxu0 0
      %1049 = vmatprep.subr.bf16.mxu0 0
      %1050 = vmatpush2.bf16.msra.mxu0 0
      %1051 = vmatprep.subr.bf16.mxu0 0
      %1052 = vmatpush2.bf16.msra.mxu0 0
      %1053 = vmatprep.subr.bf16.mxu0 0
      %1054 = vmatpush2.bf16.msra.mxu0 0
      %1055 = vmatprep.subr.bf16.mxu0 0
      %1056 = vmatpush2.bf16.msra.mxu0 0
      %1057 = vmatprep.mubr.bf16.mxu0 0
      %1058 = vmatmul.mubr.bf16.gmra.mxu0 %v729
      %v1059 = vpop.f32.mrf.mxu0
      %v1060 = vadd.f32 %v617, %v1059
      %v1061 = vpop.f32.mrf.mxu0
      %v1062 = vadd.f32 %v619, %v1061
      %v1063 = vpop.f32.mrf.mxu0
      %v1064 = vpop.f32.mrf.mxu0
      %1065 = vdwg.mxu0
      %1066 = vmatprep.subr.bf16.mxu0 0
      %1067 = vmatpush1.bf16.msra.mxu0 0
      %1068 = vmatprep.subr.bf16.mxu0 0
      %1069 = vmatpush1.bf16.msra.mxu0 0
      %1070 = vmatprep.subr.bf16.mxu0 0
      %1071 = vmatpush1.bf16.msra.mxu0 0
      %1072 = vmatprep.subr.bf16.mxu0 0
      %1073 = vmatpush1.bf16.msra.mxu0 0
      %1074 = vmatprep.subr.bf16.mxu0 0
      %1075 = vmatpush1.bf16.msra.mxu0 0
      %1076 = vmatprep.subr.bf16.mxu0 0
      %1077 = vmatpush1.bf16.msra.mxu0 0
      %1078 = vmatprep.subr.bf16.mxu0 0
      %1079 = vmatpush1.bf16.msra.mxu0 0
      %1080 = vmatprep.subr.bf16.mxu0 %v777
      %1081 = vmatpush1.bf16.msra.mxu0 %v774
      %1082 = vmatprep.subr.bf16.mxu0 0
      %1083 = vmatpush2.bf16.msra.mxu0 0
      %1084 = vmatprep.subr.bf16.mxu0 0
      %1085 = vmatpush2.bf16.msra.mxu0 0
      %1086 = vmatprep.subr.bf16.mxu0 0
      %1087 = vmatpush2.bf16.msra.mxu0 0
      %1088 = vmatprep.subr.bf16.mxu0 0
      %1089 = vmatpush2.bf16.msra.mxu0 0
      %1090 = vmatprep.subr.bf16.mxu0 0
      %1091 = vmatpush2.bf16.msra.mxu0 0
      %1092 = vmatprep.subr.bf16.mxu0 0
      %1093 = vmatpush2.bf16.msra.mxu0 0
      %1094 = vmatprep.subr.bf16.mxu0 0
      %1095 = vmatpush2.bf16.msra.mxu0 0
      %1096 = vmatprep.subr.bf16.mxu0 0
      %1097 = vmatpush2.bf16.msra.mxu0 0
      %1098 = vmatprep.mubr.bf16.mxu0 0
      %1099 = vmatmul.mubr.bf16.gmra.mxu0 %v729
      %v1100 = vpop.f32.mrf.mxu0
      %v1101 = vadd.f32 %v658, %v1100
      %v1102 = vpop.f32.mrf.mxu0
      %v1103 = vadd.f32 %v660, %v1102
      %v1104 = vpop.f32.mrf.mxu0
      %v1105 = vpop.f32.mrf.mxu0
      %1106 = vdwg.mxu0
      %s1107 = scalar_lea.vmem %s168, 8
      %v1108 = vld [vmem:[%s1107] sm:$0xf]
      %v1109 = vld [vmem:[%s173 + $0x8] sm:$0xff]
      %v1110 = vld [vmem:[%s173 + $0x10] sm:$0xff]
      %v1111 = vld [vmem:[%s173 + $0x18] sm:$0xff]
      %v1112 = vld [vmem:[%s173 + $0x20] sm:$0xff]
      %v1113 = vld [vmem:[%s173 + $0x28] sm:$0xff]
      %v1114 = vld [vmem:[%s173 + $0x30] sm:$0xff]
      %v1115 = vld [vmem:[%s173 + $0x38] sm:$0xff]
      %v1116 = vld [vmem:[%s173 + $0x40] sm:$0xff]
      %v1117 = vld [vmem:[%s173 + $0x50] sm:$0x33]
      %v1118 = vld [vmem:[%s173 + $0x58] sm:$0x33]
      %v1119 = vld [vmem:[%s173 + $0x60] sm:$0x33]
      %v1120 = vld [vmem:[%s173 + $0x68] sm:$0x33]
      %v1121 = vld [vmem:[%s173 + $0x70] sm:$0x33]
      %v1122 = vld [vmem:[%s173 + $0x78] sm:$0x33]
      %v1123 = vld [vmem:[%s173 + $0x80] sm:$0x33]
      %v1124 = vld [vmem:[%s173 + $0x88] sm:$0x33]
      %v1141 = vunpack.c.l.b16 %v1109
      %v1142 = vunpack.c.h.b16 %v1109
      %v1143 = vunpack.c.l.b16 %v1110
      %v1144 = vunpack.c.h.b16 %v1110
      %v1145 = vunpack.c.l.b16 %v1111
      %v1146 = vunpack.c.h.b16 %v1111
      %v1147 = vunpack.c.l.b16 %v1112
      %v1148 = vunpack.c.h.b16 %v1112
      %v1149 = vunpack.c.l.b16 %v1113
      %v1150 = vunpack.c.h.b16 %v1113
      %v1151 = vunpack.c.l.b16 %v1114
      %v1152 = vunpack.c.h.b16 %v1114
      %v1153 = vunpack.c.l.b16 %v1115
      %v1154 = vunpack.c.h.b16 %v1115
      %v1155 = vunpack.c.l.b16 %v1116
      %v1156 = vunpack.c.h.b16 %v1116
      %v1157 = vunpack.c.l.b16 %v1117
      %v1158 = vunpack.c.h.b16 %v1117
      %v1159 = vunpack.c.l.b16 %v1118
      %v1160 = vunpack.c.h.b16 %v1118
      %v1161 = vunpack.c.l.b16 %v1119
      %v1162 = vunpack.c.h.b16 %v1119
      %v1163 = vunpack.c.l.b16 %v1120
      %v1164 = vunpack.c.h.b16 %v1120
      %v1165 = vunpack.c.l.b16 %v1121
      %v1166 = vunpack.c.h.b16 %v1121
      %v1167 = vunpack.c.l.b16 %v1122
      %v1168 = vunpack.c.h.b16 %v1122
      %v1169 = vunpack.c.l.b16 %v1123
      %v1170 = vunpack.c.h.b16 %v1123
      %v1171 = vunpack.c.l.b16 %v1124
      %v1172 = vunpack.c.h.b16 %v1124
      %v1173 = vpack.c.b16 %v1157, %v1141
      %v1174 = vpack.c.b16 %v1158, %v1142
      %v1175 = vpack.c.b16 %v1159, %v1143
      %v1176 = vpack.c.b16 %v1160, %v1144
      %v1177 = vpack.c.b16 %v1161, %v1145
      %v1178 = vpack.c.b16 %v1162, %v1146
      %v1179 = vpack.c.b16 %v1163, %v1147
      %v1180 = vpack.c.b16 %v1164, %v1148
      %v1181 = vpack.c.b16 %v1165, %v1149
      %v1182 = vpack.c.b16 %v1166, %v1150
      %v1183 = vpack.c.b16 %v1167, %v1151
      %v1184 = vpack.c.b16 %v1168, %v1152
      %v1185 = vpack.c.b16 %v1169, %v1153
      %v1186 = vpack.c.b16 %v1170, %v1154
      %v1187 = vpack.c.b16 %v1171, %v1155
      %v1188 = vpack.c.b16 %v1172, %v1156
      %v1190 = vsel %vm283, %v1108, 0
      %v1193 = vsel %vm287, %v1173, 0
      %v1196 = vsel %vm287, %v1174, 0
      %v1199 = vsel %vm287, %v1175, 0
      %v1202 = vsel %vm287, %v1176, 0
      %v1205 = vsel %vm287, %v1177, 0
      %v1208 = vsel %vm287, %v1178, 0
      %v1211 = vsel %vm287, %v1179, 0
      %v1214 = vsel %vm287, %v1180, 0
      %v1217 = vsel %vm287, %v1181, 0
      %v1220 = vsel %vm287, %v1182, 0
      %v1223 = vsel %vm287, %v1183, 0
      %v1226 = vsel %vm287, %v1184, 0
      %v1229 = vsel %vm287, %v1185, 0
      %v1232 = vsel %vm287, %v1186, 0
      %v1235 = vsel %vm287, %v1187, 0
      %v1238 = vsel %vm287, %v1188, 0
      %1240 = vmatprep.subr.bf16.mxu0 0
      %1241 = vmatpush1.bf16.msra.mxu0 0
      %1242 = vmatprep.subr.bf16.mxu0 0
      %1243 = vmatpush1.bf16.msra.mxu0 0
      %1244 = vmatprep.subr.bf16.mxu0 0
      %1245 = vmatpush1.bf16.msra.mxu0 0
      %1246 = vmatprep.subr.bf16.mxu0 0
      %1247 = vmatpush1.bf16.msra.mxu0 0
      %1248 = vmatprep.subr.bf16.mxu0 0
      %1249 = vmatpush1.bf16.msra.mxu0 0
      %1250 = vmatprep.subr.bf16.mxu0 0
      %1251 = vmatpush1.bf16.msra.mxu0 0
      %1252 = vmatprep.subr.bf16.mxu0 0
      %1253 = vmatpush1.bf16.msra.mxu0 0
      %1254 = vmatprep.subr.bf16.mxu0 %v1196
      %1255 = vmatpush1.bf16.msra.mxu0 %v1193
      %1256 = vmatprep.subr.bf16.mxu0 0
      %1257 = vmatpush2.bf16.msra.mxu0 0
      %1258 = vmatprep.subr.bf16.mxu0 0
      %1259 = vmatpush2.bf16.msra.mxu0 0
      %1260 = vmatprep.subr.bf16.mxu0 0
      %1261 = vmatpush2.bf16.msra.mxu0 0
      %1262 = vmatprep.subr.bf16.mxu0 0
      %1263 = vmatpush2.bf16.msra.mxu0 0
      %1264 = vmatprep.subr.bf16.mxu0 0
      %1265 = vmatpush2.bf16.msra.mxu0 0
      %1266 = vmatprep.subr.bf16.mxu0 0
      %1267 = vmatpush2.bf16.msra.mxu0 0
      %1268 = vmatprep.subr.bf16.mxu0 0
      %1269 = vmatpush2.bf16.msra.mxu0 0
      %1270 = vmatprep.subr.bf16.mxu0 0
      %1271 = vmatpush2.bf16.msra.mxu0 0
      %1272 = vmatprep.mubr.bf16.mxu0 0
      %1273 = vmatmul.mubr.bf16.gmra.mxu0 %v1190
      %v1274 = vpop.f32.mrf.mxu0
      %v1275 = vadd.f32 0.0, %v1274
      %v1276 = vpop.f32.mrf.mxu0
      %v1277 = vadd.f32 0.0, %v1276
      %v1278 = vpop.f32.mrf.mxu0
      %v1279 = vpop.f32.mrf.mxu0
      %1280 = vdwg.mxu0
      %1281 = vmatprep.subr.bf16.mxu0 0
      %1282 = vmatpush1.bf16.msra.mxu0 0
      %1283 = vmatprep.subr.bf16.mxu0 0
      %1284 = vmatpush1.bf16.msra.mxu0 0
      %1285 = vmatprep.subr.bf16.mxu0 0
      %1286 = vmatpush1.bf16.msra.mxu0 0
      %1287 = vmatprep.subr.bf16.mxu0 0
      %1288 = vmatpush1.bf16.msra.mxu0 0
      %1289 = vmatprep.subr.bf16.mxu0 0
      %1290 = vmatpush1.bf16.msra.mxu0 0
      %1291 = vmatprep.subr.bf16.mxu0 0
      %1292 = vmatpush1.bf16.msra.mxu0 0
      %1293 = vmatprep.subr.bf16.mxu0 0
      %1294 = vmatpush1.bf16.msra.mxu0 0
      %1295 = vmatprep.subr.bf16.mxu0 %v1202
      %1296 = vmatpush1.bf16.msra.mxu0 %v1199
      %1297 = vmatprep.subr.bf16.mxu0 0
      %1298 = vmatpush2.bf16.msra.mxu0 0
      %1299 = vmatprep.subr.bf16.mxu0 0
      %1300 = vmatpush2.bf16.msra.mxu0 0
      %1301 = vmatprep.subr.bf16.mxu0 0
      %1302 = vmatpush2.bf16.msra.mxu0 0
      %1303 = vmatprep.subr.bf16.mxu0 0
      %1304 = vmatpush2.bf16.msra.mxu0 0
      %1305 = vmatprep.subr.bf16.mxu0 0
      %1306 = vmatpush2.bf16.msra.mxu0 0
      %1307 = vmatprep.subr.bf16.mxu0 0
      %1308 = vmatpush2.bf16.msra.mxu0 0
      %1309 = vmatprep.subr.bf16.mxu0 0
      %1310 = vmatpush2.bf16.msra.mxu0 0
      %1311 = vmatprep.subr.bf16.mxu0 0
      %1312 = vmatpush2.bf16.msra.mxu0 0
      %1313 = vmatprep.mubr.bf16.mxu0 0
      %1314 = vmatmul.mubr.bf16.gmra.mxu0 %v1190
      %v1315 = vpop.f32.mrf.mxu0
      %v1316 = vadd.f32 0.0, %v1315
      %v1317 = vpop.f32.mrf.mxu0
      %v1318 = vadd.f32 0.0, %v1317
      %v1319 = vpop.f32.mrf.mxu0
      %v1320 = vpop.f32.mrf.mxu0
      %1321 = vdwg.mxu0
      %1322 = vmatprep.subr.bf16.mxu0 0
      %1323 = vmatpush1.bf16.msra.mxu0 0
      %1324 = vmatprep.subr.bf16.mxu0 0
      %1325 = vmatpush1.bf16.msra.mxu0 0
      %1326 = vmatprep.subr.bf16.mxu0 0
      %1327 = vmatpush1.bf16.msra.mxu0 0
      %1328 = vmatprep.subr.bf16.mxu0 0
      %1329 = vmatpush1.bf16.msra.mxu0 0
      %1330 = vmatprep.subr.bf16.mxu0 0
      %1331 = vmatpush1.bf16.msra.mxu0 0
      %1332 = vmatprep.subr.bf16.mxu0 0
      %1333 = vmatpush1.bf16.msra.mxu0 0
      %1334 = vmatprep.subr.bf16.mxu0 0
      %1335 = vmatpush1.bf16.msra.mxu0 0
      %1336 = vmatprep.subr.bf16.mxu0 %v1208
      %1337 = vmatpush1.bf16.msra.mxu0 %v1205
      %1338 = vmatprep.subr.bf16.mxu0 0
      %1339 = vmatpush2.bf16.msra.mxu0 0
      %1340 = vmatprep.subr.bf16.mxu0 0
      %1341 = vmatpush2.bf16.msra.mxu0 0
      %1342 = vmatprep.subr.bf16.mxu0 0
      %1343 = vmatpush2.bf16.msra.mxu0 0
      %1344 = vmatprep.subr.bf16.mxu0 0
      %1345 = vmatpush2.bf16.msra.mxu0 0
      %1346 = vmatprep.subr.bf16.mxu0 0
      %1347 = vmatpush2.bf16.msra.mxu0 0
      %1348 = vmatprep.subr.bf16.mxu0 0
      %1349 = vmatpush2.bf16.msra.mxu0 0
      %1350 = vmatprep.subr.bf16.mxu0 0
      %1351 = vmatpush2.bf16.msra.mxu0 0
      %1352 = vmatprep.subr.bf16.mxu0 0
      %1353 = vmatpush2.bf16.msra.mxu0 0
      %1354 = vmatprep.mubr.bf16.mxu0 0
      %1355 = vmatmul.mubr.bf16.gmra.mxu0 %v1190
      %v1356 = vpop.f32.mrf.mxu0
      %v1357 = vadd.f32 0.0, %v1356
      %v1358 = vpop.f32.mrf.mxu0
      %v1359 = vadd.f32 0.0, %v1358
      %v1360 = vpop.f32.mrf.mxu0
      %v1361 = vpop.f32.mrf.mxu0
      %1362 = vdwg.mxu0
      %1363 = vmatprep.subr.bf16.mxu0 0
      %1364 = vmatpush1.bf16.msra.mxu0 0
      %1365 = vmatprep.subr.bf16.mxu0 0
      %1366 = vmatpush1.bf16.msra.mxu0 0
      %1367 = vmatprep.subr.bf16.mxu0 0
      %1368 = vmatpush1.bf16.msra.mxu0 0
      %1369 = vmatprep.subr.bf16.mxu0 0
      %1370 = vmatpush1.bf16.msra.mxu0 0
      %1371 = vmatprep.subr.bf16.mxu0 0
      %1372 = vmatpush1.bf16.msra.mxu0 0
      %1373 = vmatprep.subr.bf16.mxu0 0
      %1374 = vmatpush1.bf16.msra.mxu0 0
      %1375 = vmatprep.subr.bf16.mxu0 0
      %1376 = vmatpush1.bf16.msra.mxu0 0
      %1377 = vmatprep.subr.bf16.mxu0 %v1214
      %1378 = vmatpush1.bf16.msra.mxu0 %v1211
      %1379 = vmatprep.subr.bf16.mxu0 0
      %1380 = vmatpush2.bf16.msra.mxu0 0
      %1381 = vmatprep.subr.bf16.mxu0 0
      %1382 = vmatpush2.bf16.msra.mxu0 0
      %1383 = vmatprep.subr.bf16.mxu0 0
      %1384 = vmatpush2.bf16.msra.mxu0 0
      %1385 = vmatprep.subr.bf16.mxu0 0
      %1386 = vmatpush2.bf16.msra.mxu0 0
      %1387 = vmatprep.subr.bf16.mxu0 0
      %1388 = vmatpush2.bf16.msra.mxu0 0
      %1389 = vmatprep.subr.bf16.mxu0 0
      %1390 = vmatpush2.bf16.msra.mxu0 0
      %1391 = vmatprep.subr.bf16.mxu0 0
      %1392 = vmatpush2.bf16.msra.mxu0 0
      %1393 = vmatprep.subr.bf16.mxu0 0
      %1394 = vmatpush2.bf16.msra.mxu0 0
      %1395 = vmatprep.mubr.bf16.mxu0 0
      %1396 = vmatmul.mubr.bf16.gmra.mxu0 %v1190
      %v1397 = vpop.f32.mrf.mxu0
      %v1398 = vadd.f32 0.0, %v1397
      %v1399 = vpop.f32.mrf.mxu0
      %v1400 = vadd.f32 0.0, %v1399
      %v1401 = vpop.f32.mrf.mxu0
      %v1402 = vpop.f32.mrf.mxu0
      %1403 = vdwg.mxu0
      %1404 = vmatprep.subr.bf16.mxu0 0
      %1405 = vmatpush1.bf16.msra.mxu0 0
      %1406 = vmatprep.subr.bf16.mxu0 0
      %1407 = vmatpush1.bf16.msra.mxu0 0
      %1408 = vmatprep.subr.bf16.mxu0 0
      %1409 = vmatpush1.bf16.msra.mxu0 0
      %1410 = vmatprep.subr.bf16.mxu0 0
      %1411 = vmatpush1.bf16.msra.mxu0 0
      %1412 = vmatprep.subr.bf16.mxu0 0
      %1413 = vmatpush1.bf16.msra.mxu0 0
      %1414 = vmatprep.subr.bf16.mxu0 0
      %1415 = vmatpush1.bf16.msra.mxu0 0
      %1416 = vmatprep.subr.bf16.mxu0 0
      %1417 = vmatpush1.bf16.msra.mxu0 0
      %1418 = vmatprep.subr.bf16.mxu0 %v1220
      %1419 = vmatpush1.bf16.msra.mxu0 %v1217
      %1420 = vmatprep.subr.bf16.mxu0 0
      %1421 = vmatpush2.bf16.msra.mxu0 0
      %1422 = vmatprep.subr.bf16.mxu0 0
      %1423 = vmatpush2.bf16.msra.mxu0 0
      %1424 = vmatprep.subr.bf16.mxu0 0
      %1425 = vmatpush2.bf16.msra.mxu0 0
      %1426 = vmatprep.subr.bf16.mxu0 0
      %1427 = vmatpush2.bf16.msra.mxu0 0
      %1428 = vmatprep.subr.bf16.mxu0 0
      %1429 = vmatpush2.bf16.msra.mxu0 0
      %1430 = vmatprep.subr.bf16.mxu0 0
      %1431 = vmatpush2.bf16.msra.mxu0 0
      %1432 = vmatprep.subr.bf16.mxu0 0
      %1433 = vmatpush2.bf16.msra.mxu0 0
      %1434 = vmatprep.subr.bf16.mxu0 0
      %1435 = vmatpush2.bf16.msra.mxu0 0
      %1436 = vmatprep.mubr.bf16.mxu0 0
      %1437 = vmatmul.mubr.bf16.gmra.mxu0 %v1190
      %v1438 = vpop.f32.mrf.mxu0
      %v1439 = vadd.f32 0.0, %v1438
      %v1440 = vpop.f32.mrf.mxu0
      %v1441 = vadd.f32 0.0, %v1440
      %v1442 = vpop.f32.mrf.mxu0
      %v1443 = vpop.f32.mrf.mxu0
      %1444 = vdwg.mxu0
      %1445 = vmatprep.subr.bf16.mxu0 0
      %1446 = vmatpush1.bf16.msra.mxu0 0
      %1447 = vmatprep.subr.bf16.mxu0 0
      %1448 = vmatpush1.bf16.msra.mxu0 0
      %1449 = vmatprep.subr.bf16.mxu0 0
      %1450 = vmatpush1.bf16.msra.mxu0 0
      %1451 = vmatprep.subr.bf16.mxu0 0
      %1452 = vmatpush1.bf16.msra.mxu0 0
      %1453 = vmatprep.subr.bf16.mxu0 0
      %1454 = vmatpush1.bf16.msra.mxu0 0
      %1455 = vmatprep.subr.bf16.mxu0 0
      %1456 = vmatpush1.bf16.msra.mxu0 0
      %1457 = vmatprep.subr.bf16.mxu0 0
      %1458 = vmatpush1.bf16.msra.mxu0 0
      %1459 = vmatprep.subr.bf16.mxu0 %v1226
      %1460 = vmatpush1.bf16.msra.mxu0 %v1223
      %1461 = vmatprep.subr.bf16.mxu0 0
      %1462 = vmatpush2.bf16.msra.mxu0 0
      %1463 = vmatprep.subr.bf16.mxu0 0
      %1464 = vmatpush2.bf16.msra.mxu0 0
      %1465 = vmatprep.subr.bf16.mxu0 0
      %1466 = vmatpush2.bf16.msra.mxu0 0
      %1467 = vmatprep.subr.bf16.mxu0 0
      %1468 = vmatpush2.bf16.msra.mxu0 0
      %1469 = vmatprep.subr.bf16.mxu0 0
      %1470 = vmatpush2.bf16.msra.mxu0 0
      %1471 = vmatprep.subr.bf16.mxu0 0
      %1472 = vmatpush2.bf16.msra.mxu0 0
      %1473 = vmatprep.subr.bf16.mxu0 0
      %1474 = vmatpush2.bf16.msra.mxu0 0
      %1475 = vmatprep.subr.bf16.mxu0 0
      %1476 = vmatpush2.bf16.msra.mxu0 0
      %1477 = vmatprep.mubr.bf16.mxu0 0
      %1478 = vmatmul.mubr.bf16.gmra.mxu0 %v1190
      %v1479 = vpop.f32.mrf.mxu0
      %v1480 = vadd.f32 0.0, %v1479
      %v1481 = vpop.f32.mrf.mxu0
      %v1482 = vadd.f32 0.0, %v1481
      %v1483 = vpop.f32.mrf.mxu0
      %v1484 = vpop.f32.mrf.mxu0
      %1485 = vdwg.mxu0
      %1486 = vmatprep.subr.bf16.mxu0 0
      %1487 = vmatpush1.bf16.msra.mxu0 0
      %1488 = vmatprep.subr.bf16.mxu0 0
      %1489 = vmatpush1.bf16.msra.mxu0 0
      %1490 = vmatprep.subr.bf16.mxu0 0
      %1491 = vmatpush1.bf16.msra.mxu0 0
      %1492 = vmatprep.subr.bf16.mxu0 0
      %1493 = vmatpush1.bf16.msra.mxu0 0
      %1494 = vmatprep.subr.bf16.mxu0 0
      %1495 = vmatpush1.bf16.msra.mxu0 0
      %1496 = vmatprep.subr.bf16.mxu0 0
      %1497 = vmatpush1.bf16.msra.mxu0 0
      %1498 = vmatprep.subr.bf16.mxu0 0
      %1499 = vmatpush1.bf16.msra.mxu0 0
      %1500 = vmatprep.subr.bf16.mxu0 %v1232
      %1501 = vmatpush1.bf16.msra.mxu0 %v1229
      %1502 = vmatprep.subr.bf16.mxu0 0
      %1503 = vmatpush2.bf16.msra.mxu0 0
      %1504 = vmatprep.subr.bf16.mxu0 0
      %1505 = vmatpush2.bf16.msra.mxu0 0
      %1506 = vmatprep.subr.bf16.mxu0 0
      %1507 = vmatpush2.bf16.msra.mxu0 0
      %1508 = vmatprep.subr.bf16.mxu0 0
      %1509 = vmatpush2.bf16.msra.mxu0 0
      %1510 = vmatprep.subr.bf16.mxu0 0
      %1511 = vmatpush2.bf16.msra.mxu0 0
      %1512 = vmatprep.subr.bf16.mxu0 0
      %1513 = vmatpush2.bf16.msra.mxu0 0
      %1514 = vmatprep.subr.bf16.mxu0 0
      %1515 = vmatpush2.bf16.msra.mxu0 0
      %1516 = vmatprep.subr.bf16.mxu0 0
      %1517 = vmatpush2.bf16.msra.mxu0 0
      %1518 = vmatprep.mubr.bf16.mxu0 0
      %1519 = vmatmul.mubr.bf16.gmra.mxu0 %v1190
      %v1520 = vpop.f32.mrf.mxu0
      %v1521 = vadd.f32 0.0, %v1520
      %v1522 = vpop.f32.mrf.mxu0
      %v1523 = vadd.f32 0.0, %v1522
      %v1524 = vpop.f32.mrf.mxu0
      %v1525 = vpop.f32.mrf.mxu0
      %1526 = vdwg.mxu0
      %1527 = vmatprep.subr.bf16.mxu0 0
      %1528 = vmatpush1.bf16.msra.mxu0 0
      %1529 = vmatprep.subr.bf16.mxu0 0
      %1530 = vmatpush1.bf16.msra.mxu0 0
      %1531 = vmatprep.subr.bf16.mxu0 0
      %1532 = vmatpush1.bf16.msra.mxu0 0
      %1533 = vmatprep.subr.bf16.mxu0 0
      %1534 = vmatpush1.bf16.msra.mxu0 0
      %1535 = vmatprep.subr.bf16.mxu0 0
      %1536 = vmatpush1.bf16.msra.mxu0 0
      %1537 = vmatprep.subr.bf16.mxu0 0
      %1538 = vmatpush1.bf16.msra.mxu0 0
      %1539 = vmatprep.subr.bf16.mxu0 0
      %1540 = vmatpush1.bf16.msra.mxu0 0
      %1541 = vmatprep.subr.bf16.mxu0 %v1238
      %1542 = vmatpush1.bf16.msra.mxu0 %v1235
      %1543 = vmatprep.subr.bf16.mxu0 0
      %1544 = vmatpush2.bf16.msra.mxu0 0
      %1545 = vmatprep.subr.bf16.mxu0 0
      %1546 = vmatpush2.bf16.msra.mxu0 0
      %1547 = vmatprep.subr.bf16.mxu0 0
      %1548 = vmatpush2.bf16.msra.mxu0 0
      %1549 = vmatprep.subr.bf16.mxu0 0
      %1550 = vmatpush2.bf16.msra.mxu0 0
      %1551 = vmatprep.subr.bf16.mxu0 0
      %1552 = vmatpush2.bf16.msra.mxu0 0
      %1553 = vmatprep.subr.bf16.mxu0 0
      %1554 = vmatpush2.bf16.msra.mxu0 0
      %1555 = vmatprep.subr.bf16.mxu0 0
      %1556 = vmatpush2.bf16.msra.mxu0 0
      %1557 = vmatprep.subr.bf16.mxu0 0
      %1558 = vmatpush2.bf16.msra.mxu0 0
      %1559 = vmatprep.mubr.bf16.mxu0 0
      %1560 = vmatmul.mubr.bf16.gmra.mxu0 %v1190
      %v1561 = vpop.f32.mrf.mxu0
      %v1562 = vadd.f32 0.0, %v1561
      %v1563 = vpop.f32.mrf.mxu0
      %v1564 = vadd.f32 0.0, %v1563
      %v1565 = vpop.f32.mrf.mxu0
      %v1566 = vpop.f32.mrf.mxu0
      %1567 = vdwg.mxu0
      %v1568 = vadd.f32 %v814, %v1275
      %v1569 = vadd.f32 %v816, %v1277
      %v1570 = vadd.f32 %v855, %v1316
      %v1571 = vadd.f32 %v857, %v1318
      %v1572 = vadd.f32 %v896, %v1357
      %v1573 = vadd.f32 %v898, %v1359
      %v1574 = vadd.f32 %v937, %v1398
      %v1575 = vadd.f32 %v939, %v1400
      %v1576 = vadd.f32 %v978, %v1439
      %v1577 = vadd.f32 %v980, %v1441
      %v1578 = vadd.f32 %v1019, %v1480
      %v1579 = vadd.f32 %v1021, %v1482
      %v1580 = vadd.f32 %v1060, %v1521
      %v1581 = vadd.f32 %v1062, %v1523
      %v1582 = vadd.f32 %v1101, %v1562
      %v1583 = vadd.f32 %v1103, %v1564
      %1584 = vst [vmem:[%s182] sm:$0xff] %v1568
      %1585 = vst [vmem:[%s182 + $0x8] sm:$0xff] %v1569
      %1586 = vst [vmem:[%s182 + $0x10] sm:$0xff] %v1570
      %1587 = vst [vmem:[%s182 + $0x18] sm:$0xff] %v1571
      %1588 = vst [vmem:[%s182 + $0x20] sm:$0xff] %v1572
      %1589 = vst [vmem:[%s182 + $0x28] sm:$0xff] %v1573
      %1590 = vst [vmem:[%s182 + $0x30] sm:$0xff] %v1574
      %1591 = vst [vmem:[%s182 + $0x38] sm:$0xff] %v1575
      %1592 = vst [vmem:[%s182 + $0x40] sm:$0xff] %v1576
      %1593 = vst [vmem:[%s182 + $0x48] sm:$0xff] %v1577
      %1594 = vst [vmem:[%s182 + $0x50] sm:$0xff] %v1578
      %1595 = vst [vmem:[%s182 + $0x58] sm:$0xff] %v1579
      %1596 = vst [vmem:[%s182 + $0x60] sm:$0xff] %v1580
      %1597 = vst [vmem:[%s182 + $0x68] sm:$0xff] %v1581
      %1598 = vst [vmem:[%s182 + $0x70] sm:$0xff] %v1582
      %1599 = vst [vmem:[%s182 + $0x78] sm:$0xff] %v1583
      %p1600 = scmp.lt.s32.totalorder %s17, 1
      %s1601 = scalar_select %p1600, %s17, 1
      %p1602 = scmp.lt.s32.totalorder %s18, 0
      %s1603 = scalar_select %p1602, %s18, 0
      %s1604 = smul.addr %s1603, 16
      %s1605 = smul.addr %s1601, 16
      %s1606 = sadd.s32 %s1604, %s1605
      %s1607 = smul.addr %s1606, 8
      %s1608 = scalar_lea.vmem %s2, %s1607
      // Predicated region
      $region29: #{td_layer_conv2d.1} parent=27 // pred_check
        %p1609 = pneg %p97
      $region30: #{td_layer_conv2d.1} parent=27 // pred_check_branch
        %1611 = sbr.rel (%p1609) target = $region32
      $region31: #{td_layer_conv2d.1} parent=27 // pred_region
        _
      $region32: #{td_layer_conv2d.1} parent=27 // pred_fallthru
        _
    $region28: #{td_layer_conv2d.1} parent=5 // pred_fallthru
      _
    %p1612 = scmp.le.s32.totalorder 2, %s8
    // Predicated region
    $region33: #{td_layer_conv2d.1} parent=5 // pred_check
      %p1613 = pneg %p1612
    $region34: #{td_layer_conv2d.1} parent=5 // pred_check_branch
      %1615 = sbr.rel (%p1613) target = $region36
    $region35: #{td_layer_conv2d.1} parent=5 // pred_region
      %s1616 = ssub.s32 %s8, 2
      // Predicated region
      $region37: #{td_layer_conv2d.1} parent=35 // pred_check
        %p1617 = pneg %p103
      $region38: #{td_layer_conv2d.1} parent=35 // pred_check_branch
        %1619 = sbr.rel (%p1617) target = $region40
      $region39: #{td_layer_conv2d.1} parent=35 // pred_region
        %p1620 = scmp.lt.s32.totalorder %s19, 1
        %s1621 = scalar_select %p1620, %s19, 1
        %p1622 = scmp.lt.s32.totalorder %s20, 0
        %s1623 = scalar_select %p1622, %s20, 0
        %s1624 = smul.addr %s1623, 16
        %s1625 = smul.addr %s1621, 16
        %s1626 = sadd.s32 %s1624, %s1625
        %s1627 = smul.addr %s1626, 8
        %s1628 = scalar_lea.vmem %s2, %s1627
      $region40: #{td_layer_conv2d.1} parent=35 // pred_fallthru
        _
    $region36: #{td_layer_conv2d.1} parent=5 // pred_fallthru
      _
  $region6: #{td_layer_conv2d.1} parent=0 // loop_footer
    %s12 = sadd.s32 1, %s8
  $region7: #{td_layer_conv2d.1} parent=0 // loop_footer_branch
    %7 = sbr.rel target = $region3
  $region8: #{td_layer_conv2d.1} parent=0 // loop_exit
    _

</llo_original>
